<compile_context>
chip_gen: v7x
topology: tpu7x:2x2x1
jax: 0.10.0
libtpu: 0.0.40
codegen_flags: <defaults>
</compile_context>

<pallas_src>
import jax
import jax.numpy as jnp
from jax import lax
from jax.experimental import pallas as pl
from jax.experimental.pallas import tpu as pltpu

_NEG = -1e30            # effectively -inf for padded tag lanes
_FULL_UNROLL_MAX_T = 32  # fully unroll (static slices, coalesced store) up to this T


def _round_up(x, m):
    return (x + m - 1) // m * m


def lstm_tagger_kernel(emb_ref, wih_ref, whh_ref, b_ref,
                       wtag_ref, btag_ref, h0_ref, c0_ref,
                       scores_ref, hT_ref, cT_ref,
                       xg_ref, hs_ref):
    T = emb_ref.shape[0]
    Hp = h0_ref.shape[1]                      # padded hidden dim (multiple of 128)

    # --- Hoisted input-to-hidden projection for all timesteps (single MXU matmul). ---
    xg_ref[...] = (jnp.dot(emb_ref[...], wih_ref[...],
                           preferred_element_type=jnp.float32) + b_ref[...])

    def cell(gates, h, c):
        # Gate order along 4Hp is (i, f, o, g): the three sigmoid gates are lane
        # contiguous -> one sigmoid launch over [0:3Hp) + one tanh over [3Hp:4Hp).
        sig = jax.nn.sigmoid(gates[:, 0:3 * Hp])
        i_g = sig[:, 0:Hp]
        f_g = sig[:, Hp:2 * Hp]
        o_g = sig[:, 2 * Hp:3 * Hp]
        g_g = jnp.tanh(gates[:, 3 * Hp:4 * Hp])
        c_new = f_g * c + i_g * g_g
        h_new = o_g * jnp.tanh(c_new)
        return h_new, c_new

    if T <= _FULL_UNROLL_MAX_T:
        # Small T: Python-unrolled recurrence, static slices, h rows kept in vregs and
        # written once as a single dense block (no per-step masked stores).
        h = h0_ref[...]
        c = c0_ref[...]
        rows = []
        for t in range(T):
            # W_hh is streamed from VMEM each step (no 64-vreg hoist / spills).
            gates = (xg_ref[t:t + 1, :]
                     + jnp.dot(h, whh_ref[...], preferred_element_type=jnp.float32))
            h, c = cell(gates, h, c)
            rows.append(h)
        hs = jnp.concatenate(rows, axis=0)                       # (T, Hp), one value
        hT_ref[...] = h
        cT_ref[...] = c
    else:
        # Long T: bounded unroll; per-step rows go to a VMEM scratch.
        def step(t, carry):
            h, c = carry
            gates = (xg_ref[pl.ds(t, 1), :]
                     + jnp.dot(h, whh_ref[...], preferred_element_type=jnp.float32))
            h_new, c_new = cell(gates, h, c)
            hs_ref[pl.ds(t, 1), :] = h_new
            return (h_new, c_new)

        hT, cT = lax.fori_loop(0, T, step, (h0_ref[...], c0_ref[...]), unroll=8)
        hT_ref[...] = hT
        cT_ref[...] = cT
        hs = hs_ref[...]

    # --- Epilogue: hidden2tag + log_softmax for all T rows at once (one dense store). ---
    tag = (jnp.dot(hs, wtag_ref[...],
                   preferred_element_type=jnp.float32) + btag_ref[...])  # (T, Kp)
    m = jnp.max(tag, axis=1, keepdims=True)
    shifted = tag - m
    denom = jnp.sum(jnp.exp(shifted), axis=1, keepdims=True)
    scores_ref[...] = shifted - jnp.log(denom)


def lstm_tagger_forward(sentence, params):
    """Matches LSTMTagger.forward: returns (tag_scores (T,K), (h_T (H,), c_T (H,)))."""
    # TODO(synk): embedding lookup is a plain-JAX gather (XLA); move in-kernel when batched.
    emb = params["embedding"][sentence].astype(jnp.float32)      # (T, E)
    T, E = emb.shape
    H = params["w_hh"].shape[1]
    K = params["w_tag"].shape[0]

    Ep = _round_up(E, 128)
    Hp = _round_up(H, 128)
    Kp = _round_up(K, 128)

    # PyTorch gate order along 4H is (i, f, g, o); kernel wants (i, f, o, g) so the three
    # sigmoid gates are lane-contiguous. The permutation is free JAX glue.
    perm = [0, 1, 3, 2]

    # --- Plain-JAX glue: lane-pad everything (zero padding is exact, see header). ---
    emb_p = jnp.pad(emb, ((0, 0), (0, Ep - E)))                               # (T, Ep)

    wih = params["w_ih"].reshape(4, H, E)[perm, :, :]
    wih_p = jnp.pad(wih, ((0, 0), (0, Hp - H), (0, Ep - E)))
    wih_p = wih_p.reshape(4 * Hp, Ep).T                                       # (Ep, 4Hp)

    whh = params["w_hh"].reshape(4, H, H)[perm, :, :]
    whh_p = jnp.pad(whh, ((0, 0), (0, Hp - H), (0, Hp - H)))
    whh_p = whh_p.reshape(4 * Hp, Hp).T                                       # (Hp, 4Hp)

    b = (params["b_ih"] + params["b_hh"]).reshape(4, H)[perm, :]
    b_p = jnp.pad(b, ((0, 0), (0, Hp - H))).reshape(1, 4 * Hp)                # (1, 4Hp)

    wtag_p = jnp.pad(params["w_tag"], ((0, Kp - K), (0, Hp - H))).T           # (Hp, Kp)
    btag_p = jnp.pad(params["b_tag"], (0, Kp - K),
                     constant_values=_NEG).reshape(1, Kp)                     # (1, Kp)

    h0_p = jnp.pad(params["h0"], (0, Hp - H)).reshape(1, Hp)
    c0_p = jnp.pad(params["c0"], (0, Hp - H)).reshape(1, Hp)

    vmem_spec = pl.BlockSpec(memory_space=pltpu.MemorySpace.VMEM)

    out_shapes = (jax.ShapeDtypeStruct((T, Kp), jnp.float32),
                  jax.ShapeDtypeStruct((1, Hp), jnp.float32),
                  jax.ShapeDtypeStruct((1, Hp), jnp.float32))

    scores_p, hT_p, cT_p = pl.pallas_call(
        lstm_tagger_kernel,
        out_shape=out_shapes,
        in_specs=[vmem_spec] * 8,
        out_specs=(vmem_spec, vmem_spec, vmem_spec),
        scratch_shapes=[pltpu.VMEM((T, 4 * Hp), jnp.float32),   # xg: hoisted x@W_ih + b
                        pltpu.VMEM((T, Hp), jnp.float32)],      # hs: used on the long-T path
    )(emb_p, wih_p, whh_p, b_p, wtag_p, btag_p, h0_p, c0_p)

    scores = scores_p[:, :K]
    hT = hT_p[0, :H]
    cT = cT_p[0, :H]
    return scores, (hT, cT)


def _reference_forward(sentence, params):
    """Pure-JAX reference mirroring torch.nn.LSTM + Linear + log_softmax."""
    emb = params["embedding"][sentence].astype(jnp.float32)
    H = params["w_hh"].shape[1]

    def cell(carry, x_t):
        h, c = carry
        gates = (x_t @ params["w_ih"].T + params["b_ih"]
                 + h @ params["w_hh"].T + params["b_hh"])
        i_g = jax.nn.sigmoid(gates[0:H])
        f_g = jax.nn.sigmoid(gates[H:2 * H])
        g_g = jnp.tanh(gates[2 * H:3 * H])
        o_g = jax.nn.sigmoid(gates[3 * H:4 * H])
        c_new = f_g * c + i_g * g_g
        h_new = o_g * jnp.tanh(c_new)
        return (h_new, c_new), h_new

    (hT, cT), hs = lax.scan(cell, (params["h0"], params["c0"]), emb)
    tag = hs @ params["w_tag"].T + params["b_tag"]
    return jax.nn.log_softmax(tag, axis=1), (hT, cT)


if __name__ == "__main__":
    # Small shapes consistent with the module's forward (batch=1 sentence).
    T = 8            # sentence length
    E = 16           # embedding_dim
    H = 32           # hidden_dim
    V = 20           # vocab_size
    K = 8            # tagset_size

    key = jax.random.PRNGKey(0)
    ks = jax.random.split(key, 8)
    params = {
        "embedding": jax.random.normal(ks[0], (V, E), jnp.float32),
        "w_ih": jax.random.normal(ks[1], (4 * H, E), jnp.float32) * 0.1,
        "w_hh": jax.random.normal(ks[2], (4 * H, H), jnp.float32) * 0.1,
        "b_ih": jax.random.normal(ks[3], (4 * H,), jnp.float32) * 0.1,
        "b_hh": jax.random.normal(ks[4], (4 * H,), jnp.float32) * 0.1,
        "w_tag": jax.random.normal(ks[5], (K, H), jnp.float32) * 0.1,
        "b_tag": jax.random.normal(ks[6], (K,), jnp.float32) * 0.1,
        # init_hidden(): zeros(1, 1, H) -> squeezed to (H,)
        "h0": jnp.zeros((H,), jnp.float32),
        "c0": jnp.zeros((H,), jnp.float32),
    }
    sentence = jax.random.randint(ks[7], (T,), 0, V, dtype=jnp.int32)

    scores, (hT, cT) = lstm_tagger_forward(sentence, params)
    jax.block_until_ready(scores)

    ref_scores, (ref_hT, ref_cT) = _reference_forward(sentence, params)
    assert scores.shape == (T, K)
    assert jnp.allclose(scores, ref_scores, rtol=1e-3, atol=1e-3)
    assert jnp.allclose(hT, ref_hT, rtol=1e-3, atol=1e-3)
    assert jnp.allclose(cT, ref_cT, rtol=1e-3, atol=1e-3)

    print("KERNEL_OK")
</pallas_src>

<mosaic_0001>
module attributes {stable_mosaic.version = 11 : i64} {
  func.func @lstm_tagger_kernel(%arg0: memref<8x128xf32, #tpu.memory_space<vmem>>, %arg1: memref<128x512xf32, #tpu.memory_space<vmem>>, %arg2: memref<128x512xf32, #tpu.memory_space<vmem>>, %arg3: memref<1x512xf32, #tpu.memory_space<vmem>>, %arg4: memref<128x128xf32, #tpu.memory_space<vmem>>, %arg5: memref<1x128xf32, #tpu.memory_space<vmem>>, %arg6: memref<1x128xf32, #tpu.memory_space<vmem>>, %arg7: memref<1x128xf32, #tpu.memory_space<vmem>>, %arg8: memref<8x128xf32, #tpu.memory_space<vmem>>, %arg9: memref<1x128xf32, #tpu.memory_space<vmem>>, %arg10: memref<1x128xf32, #tpu.memory_space<vmem>>, %arg11: memref<8x512xf32, #tpu.memory_space<vmem>>, %arg12: memref<8x128xf32, #tpu.memory_space<vmem>>) attributes {dimension_semantics = [], scalar_prefetch = 0 : i64, scratch_operands = 2 : i64, tpu.core_type = #tpu.core_type<tc>} {
    %c0 = arith.constant 0 : index
    %c0_0 = arith.constant 0 : index
    %0 = vector.load %arg0[%c0, %c0_0] : memref<8x128xf32, #tpu.memory_space<vmem>>, vector<8x128xf32>
    %c0_1 = arith.constant 0 : index
    %c0_2 = arith.constant 0 : index
    %1 = vector.load %arg1[%c0_1, %c0_2] : memref<128x512xf32, #tpu.memory_space<vmem>>, vector<128x512xf32>
    %cst = arith.constant dense<0.000000e+00> : vector<8x512xf32>
    %2 = tpu.matmul %0, %1, %cst {dimension_numbers = #tpu.dot_dimension_numbers<[1], [0], [0], [1], [0, 0, 1, 1], [], []>} : vector<8x128xf32>, vector<128x512xf32>, vector<8x512xf32> -> vector<8x512xf32>
    %c0_3 = arith.constant 0 : index
    %c0_4 = arith.constant 0 : index
    %3 = vector.load %arg3[%c0_3, %c0_4] : memref<1x512xf32, #tpu.memory_space<vmem>>, vector<1x512xf32>
    %4 = vector.broadcast %3 : vector<1x512xf32> to vector<8x512xf32>
    %5 = arith.addf %2, %4 : vector<8x512xf32>
    %c0_5 = arith.constant 0 : index
    %c0_6 = arith.constant 0 : index
    %6 = vector.load %arg11[%c0_5, %c0_6] : memref<8x512xf32, #tpu.memory_space<vmem>>, vector<8x512xf32>
    tpu.vector_store %arg11[%c0_5, %c0_6], %5 {strides = array<i32>} : memref<8x512xf32, #tpu.memory_space<vmem>>, vector<8x512xf32>,
    %c0_7 = arith.constant 0 : index
    %c0_8 = arith.constant 0 : index
    %7 = vector.load %arg6[%c0_7, %c0_8] : memref<1x128xf32, #tpu.memory_space<vmem>>, vector<1x128xf32>
    %c0_9 = arith.constant 0 : index
    %c0_10 = arith.constant 0 : index
    %8 = vector.load %arg7[%c0_9, %c0_10] : memref<1x128xf32, #tpu.memory_space<vmem>>, vector<1x128xf32>
    %c0_11 = arith.constant 0 : index
    %c0_12 = arith.constant 0 : index
    %9 = vector.load %arg11[%c0_11, %c0_12] : memref<8x512xf32, #tpu.memory_space<vmem>>, vector<1x512xf32>
    %c0_13 = arith.constant 0 : index
    %c0_14 = arith.constant 0 : index
    %10 = vector.load %arg2[%c0_13, %c0_14] : memref<128x512xf32, #tpu.memory_space<vmem>>, vector<128x512xf32>
    %cst_15 = arith.constant dense<0.000000e+00> : vector<1x512xf32>
    %11 = tpu.matmul %7, %10, %cst_15 {dimension_numbers = #tpu.dot_dimension_numbers<[1], [0], [0], [1], [0, 0, 1, 1], [], []>} : vector<1x128xf32>, vector<128x512xf32>, vector<1x512xf32> -> vector<1x512xf32>
    %12 = arith.addf %9, %11 : vector<1x512xf32>
    %13 = vector.extract_strided_slice %12 {offsets = [0, 0], sizes = [1, 384], strides = [1, 1]} : vector<1x512xf32> to vector<1x384xf32>
    %14 = arith.negf %13 : vector<1x384xf32>
    %15 = math.exp %14 : vector<1x384xf32>
    %cst_16 = arith.constant 1.000000e+00 : f32
    %16 = vector.broadcast %cst_16 : f32 to vector<1x384xf32>
    %17 = arith.addf %16, %15 : vector<1x384xf32>
    %18 = arith.divf %16, %17 : vector<1x384xf32>
    %19 = vector.extract_strided_slice %18 {offsets = [0, 0], sizes = [1, 128], strides = [1, 1]} : vector<1x384xf32> to vector<1x128xf32>
    %20 = vector.extract_strided_slice %18 {offsets = [0, 128], sizes = [1, 128], strides = [1, 1]} : vector<1x384xf32> to vector<1x128xf32>
    %21 = vector.extract_strided_slice %18 {offsets = [0, 256], sizes = [1, 128], strides = [1, 1]} : vector<1x384xf32> to vector<1x128xf32>
    %22 = vector.extract_strided_slice %12 {offsets = [0, 384], sizes = [1, 128], strides = [1, 1]} : vector<1x512xf32> to vector<1x128xf32>
    %23 = math.tanh %22 : vector<1x128xf32>
    %24 = arith.mulf %20, %8 : vector<1x128xf32>
    %25 = arith.mulf %19, %23 : vector<1x128xf32>
    %26 = arith.addf %24, %25 : vector<1x128xf32>
    %27 = math.tanh %26 : vector<1x128xf32>
    %28 = arith.mulf %21, %27 : vector<1x128xf32>
    %c1 = arith.constant 1 : index
    %c0_17 = arith.constant 0 : index
    %29 = vector.load %arg11[%c1, %c0_17] : memref<8x512xf32, #tpu.memory_space<vmem>>, vector<1x512xf32>
    %c0_18 = arith.constant 0 : index
    %c0_19 = arith.constant 0 : index
    %30 = vector.load %arg2[%c0_18, %c0_19] : memref<128x512xf32, #tpu.memory_space<vmem>>, vector<128x512xf32>
    %cst_20 = arith.constant dense<0.000000e+00> : vector<1x512xf32>
    %31 = tpu.matmul %28, %30, %cst_20 {dimension_numbers = #tpu.dot_dimension_numbers<[1], [0], [0], [1], [0, 0, 1, 1], [], []>} : vector<1x128xf32>, vector<128x512xf32>, vector<1x512xf32> -> vector<1x512xf32>
    %32 = arith.addf %29, %31 : vector<1x512xf32>
    %33 = vector.extract_strided_slice %32 {offsets = [0, 0], sizes = [1, 384], strides = [1, 1]} : vector<1x512xf32> to vector<1x384xf32>
    %34 = arith.negf %33 : vector<1x384xf32>
    %35 = math.exp %34 : vector<1x384xf32>
    %cst_21 = arith.constant 1.000000e+00 : f32
    %36 = vector.broadcast %cst_21 : f32 to vector<1x384xf32>
    %37 = arith.addf %36, %35 : vector<1x384xf32>
    %38 = arith.divf %36, %37 : vector<1x384xf32>
    %39 = vector.extract_strided_slice %38 {offsets = [0, 0], sizes = [1, 128], strides = [1, 1]} : vector<1x384xf32> to vector<1x128xf32>
    %40 = vector.extract_strided_slice %38 {offsets = [0, 128], sizes = [1, 128], strides = [1, 1]} : vector<1x384xf32> to vector<1x128xf32>
    %41 = vector.extract_strided_slice %38 {offsets = [0, 256], sizes = [1, 128], strides = [1, 1]} : vector<1x384xf32> to vector<1x128xf32>
    %42 = vector.extract_strided_slice %32 {offsets = [0, 384], sizes = [1, 128], strides = [1, 1]} : vector<1x512xf32> to vector<1x128xf32>
    %43 = math.tanh %42 : vector<1x128xf32>
    %44 = arith.mulf %40, %26 : vector<1x128xf32>
    %45 = arith.mulf %39, %43 : vector<1x128xf32>
    %46 = arith.addf %44, %45 : vector<1x128xf32>
    %47 = math.tanh %46 : vector<1x128xf32>
    %48 = arith.mulf %41, %47 : vector<1x128xf32>
    %c2 = arith.constant 2 : index
    %c0_22 = arith.constant 0 : index
    %49 = vector.load %arg11[%c2, %c0_22] : memref<8x512xf32, #tpu.memory_space<vmem>>, vector<1x512xf32>
    %c0_23 = arith.constant 0 : index
    %c0_24 = arith.constant 0 : index
    %50 = vector.load %arg2[%c0_23, %c0_24] : memref<128x512xf32, #tpu.memory_space<vmem>>, vector<128x512xf32>
    %cst_25 = arith.constant dense<0.000000e+00> : vector<1x512xf32>
    %51 = tpu.matmul %48, %50, %cst_25 {dimension_numbers = #tpu.dot_dimension_numbers<[1], [0], [0], [1], [0, 0, 1, 1], [], []>} : vector<1x128xf32>, vector<128x512xf32>, vector<1x512xf32> -> vector<1x512xf32>
    %52 = arith.addf %49, %51 : vector<1x512xf32>
    %53 = vector.extract_strided_slice %52 {offsets = [0, 0], sizes = [1, 384], strides = [1, 1]} : vector<1x512xf32> to vector<1x384xf32>
    %54 = arith.negf %53 : vector<1x384xf32>
    %55 = math.exp %54 : vector<1x384xf32>
    %cst_26 = arith.constant 1.000000e+00 : f32
    %56 = vector.broadcast %cst_26 : f32 to vector<1x384xf32>
    %57 = arith.addf %56, %55 : vector<1x384xf32>
    %58 = arith.divf %56, %57 : vector<1x384xf32>
    %59 = vector.extract_strided_slice %58 {offsets = [0, 0], sizes = [1, 128], strides = [1, 1]} : vector<1x384xf32> to vector<1x128xf32>
    %60 = vector.extract_strided_slice %58 {offsets = [0, 128], sizes = [1, 128], strides = [1, 1]} : vector<1x384xf32> to vector<1x128xf32>
    %61 = vector.extract_strided_slice %58 {offsets = [0, 256], sizes = [1, 128], strides = [1, 1]} : vector<1x384xf32> to vector<1x128xf32>
    %62 = vector.extract_strided_slice %52 {offsets = [0, 384], sizes = [1, 128], strides = [1, 1]} : vector<1x512xf32> to vector<1x128xf32>
    %63 = math.tanh %62 : vector<1x128xf32>
    %64 = arith.mulf %60, %46 : vector<1x128xf32>
    %65 = arith.mulf %59, %63 : vector<1x128xf32>
    %66 = arith.addf %64, %65 : vector<1x128xf32>
    %67 = math.tanh %66 : vector<1x128xf32>
    %68 = arith.mulf %61, %67 : vector<1x128xf32>
    %c3 = arith.constant 3 : index
    %c0_27 = arith.constant 0 : index
    %69 = vector.load %arg11[%c3, %c0_27] : memref<8x512xf32, #tpu.memory_space<vmem>>, vector<1x512xf32>
    %c0_28 = arith.constant 0 : index
    %c0_29 = arith.constant 0 : index
    %70 = vector.load %arg2[%c0_28, %c0_29] : memref<128x512xf32, #tpu.memory_space<vmem>>, vector<128x512xf32>
    %cst_30 = arith.constant dense<0.000000e+00> : vector<1x512xf32>
    %71 = tpu.matmul %68, %70, %cst_30 {dimension_numbers = #tpu.dot_dimension_numbers<[1], [0], [0], [1], [0, 0, 1, 1], [], []>} : vector<1x128xf32>, vector<128x512xf32>, vector<1x512xf32> -> vector<1x512xf32>
    %72 = arith.addf %69, %71 : vector<1x512xf32>
    %73 = vector.extract_strided_slice %72 {offsets = [0, 0], sizes = [1, 384], strides = [1, 1]} : vector<1x512xf32> to vector<1x384xf32>
    %74 = arith.negf %73 : vector<1x384xf32>
    %75 = math.exp %74 : vector<1x384xf32>
    %cst_31 = arith.constant 1.000000e+00 : f32
    %76 = vector.broadcast %cst_31 : f32 to vector<1x384xf32>
    %77 = arith.addf %76, %75 : vector<1x384xf32>
    %78 = arith.divf %76, %77 : vector<1x384xf32>
    %79 = vector.extract_strided_slice %78 {offsets = [0, 0], sizes = [1, 128], strides = [1, 1]} : vector<1x384xf32> to vector<1x128xf32>
    %80 = vector.extract_strided_slice %78 {offsets = [0, 128], sizes = [1, 128], strides = [1, 1]} : vector<1x384xf32> to vector<1x128xf32>
    %81 = vector.extract_strided_slice %78 {offsets = [0, 256], sizes = [1, 128], strides = [1, 1]} : vector<1x384xf32> to vector<1x128xf32>
    %82 = vector.extract_strided_slice %72 {offsets = [0, 384], sizes = [1, 128], strides = [1, 1]} : vector<1x512xf32> to vector<1x128xf32>
    %83 = math.tanh %82 : vector<1x128xf32>
    %84 = arith.mulf %80, %66 : vector<1x128xf32>
    %85 = arith.mulf %79, %83 : vector<1x128xf32>
    %86 = arith.addf %84, %85 : vector<1x128xf32>
    %87 = math.tanh %86 : vector<1x128xf32>
    %88 = arith.mulf %81, %87 : vector<1x128xf32>
    %c4 = arith.constant 4 : index
    %c0_32 = arith.constant 0 : index
    %89 = vector.load %arg11[%c4, %c0_32] : memref<8x512xf32, #tpu.memory_space<vmem>>, vector<1x512xf32>
    %c0_33 = arith.constant 0 : index
    %c0_34 = arith.constant 0 : index
    %90 = vector.load %arg2[%c0_33, %c0_34] : memref<128x512xf32, #tpu.memory_space<vmem>>, vector<128x512xf32>
    %cst_35 = arith.constant dense<0.000000e+00> : vector<1x512xf32>
    %91 = tpu.matmul %88, %90, %cst_35 {dimension_numbers = #tpu.dot_dimension_numbers<[1], [0], [0], [1], [0, 0, 1, 1], [], []>} : vector<1x128xf32>, vector<128x512xf32>, vector<1x512xf32> -> vector<1x512xf32>
    %92 = arith.addf %89, %91 : vector<1x512xf32>
    %93 = vector.extract_strided_slice %92 {offsets = [0, 0], sizes = [1, 384], strides = [1, 1]} : vector<1x512xf32> to vector<1x384xf32>
    %94 = arith.negf %93 : vector<1x384xf32>
    %95 = math.exp %94 : vector<1x384xf32>
    %cst_36 = arith.constant 1.000000e+00 : f32
    %96 = vector.broadcast %cst_36 : f32 to vector<1x384xf32>
    %97 = arith.addf %96, %95 : vector<1x384xf32>
    %98 = arith.divf %96, %97 : vector<1x384xf32>
    %99 = vector.extract_strided_slice %98 {offsets = [0, 0], sizes = [1, 128], strides = [1, 1]} : vector<1x384xf32> to vector<1x128xf32>
    %100 = vector.extract_strided_slice %98 {offsets = [0, 128], sizes = [1, 128], strides = [1, 1]} : vector<1x384xf32> to vector<1x128xf32>
    %101 = vector.extract_strided_slice %98 {offsets = [0, 256], sizes = [1, 128], strides = [1, 1]} : vector<1x384xf32> to vector<1x128xf32>
    %102 = vector.extract_strided_slice %92 {offsets = [0, 384], sizes = [1, 128], strides = [1, 1]} : vector<1x512xf32> to vector<1x128xf32>
    %103 = math.tanh %102 : vector<1x128xf32>
    %104 = arith.mulf %100, %86 : vector<1x128xf32>
    %105 = arith.mulf %99, %103 : vector<1x128xf32>
    %106 = arith.addf %104, %105 : vector<1x128xf32>
    %107 = math.tanh %106 : vector<1x128xf32>
    %108 = arith.mulf %101, %107 : vector<1x128xf32>
    %c5 = arith.constant 5 : index
    %c0_37 = arith.constant 0 : index
    %109 = vector.load %arg11[%c5, %c0_37] : memref<8x512xf32, #tpu.memory_space<vmem>>, vector<1x512xf32>
    %c0_38 = arith.constant 0 : index
    %c0_39 = arith.constant 0 : index
    %110 = vector.load %arg2[%c0_38, %c0_39] : memref<128x512xf32, #tpu.memory_space<vmem>>, vector<128x512xf32>
    %cst_40 = arith.constant dense<0.000000e+00> : vector<1x512xf32>
    %111 = tpu.matmul %108, %110, %cst_40 {dimension_numbers = #tpu.dot_dimension_numbers<[1], [0], [0], [1], [0, 0, 1, 1], [], []>} : vector<1x128xf32>, vector<128x512xf32>, vector<1x512xf32> -> vector<1x512xf32>
    %112 = arith.addf %109, %111 : vector<1x512xf32>
    %113 = vector.extract_strided_slice %112 {offsets = [0, 0], sizes = [1, 384], strides = [1, 1]} : vector<1x512xf32> to vector<1x384xf32>
    %114 = arith.negf %113 : vector<1x384xf32>
    %115 = math.exp %114 : vector<1x384xf32>
    %cst_41 = arith.constant 1.000000e+00 : f32
    %116 = vector.broadcast %cst_41 : f32 to vector<1x384xf32>
    %117 = arith.addf %116, %115 : vector<1x384xf32>
    %118 = arith.divf %116, %117 : vector<1x384xf32>
    %119 = vector.extract_strided_slice %118 {offsets = [0, 0], sizes = [1, 128], strides = [1, 1]} : vector<1x384xf32> to vector<1x128xf32>
    %120 = vector.extract_strided_slice %118 {offsets = [0, 128], sizes = [1, 128], strides = [1, 1]} : vector<1x384xf32> to vector<1x128xf32>
    %121 = vector.extract_strided_slice %118 {offsets = [0, 256], sizes = [1, 128], strides = [1, 1]} : vector<1x384xf32> to vector<1x128xf32>
    %122 = vector.extract_strided_slice %112 {offsets = [0, 384], sizes = [1, 128], strides = [1, 1]} : vector<1x512xf32> to vector<1x128xf32>
    %123 = math.tanh %122 : vector<1x128xf32>
    %124 = arith.mulf %120, %106 : vector<1x128xf32>
    %125 = arith.mulf %119, %123 : vector<1x128xf32>
    %126 = arith.addf %124, %125 : vector<1x128xf32>
    %127 = math.tanh %126 : vector<1x128xf32>
    %128 = arith.mulf %121, %127 : vector<1x128xf32>
    %c6 = arith.constant 6 : index
    %c0_42 = arith.constant 0 : index
    %129 = vector.load %arg11[%c6, %c0_42] : memref<8x512xf32, #tpu.memory_space<vmem>>, vector<1x512xf32>
    %c0_43 = arith.constant 0 : index
    %c0_44 = arith.constant 0 : index
    %130 = vector.load %arg2[%c0_43, %c0_44] : memref<128x512xf32, #tpu.memory_space<vmem>>, vector<128x512xf32>
    %cst_45 = arith.constant dense<0.000000e+00> : vector<1x512xf32>
    %131 = tpu.matmul %128, %130, %cst_45 {dimension_numbers = #tpu.dot_dimension_numbers<[1], [0], [0], [1], [0, 0, 1, 1], [], []>} : vector<1x128xf32>, vector<128x512xf32>, vector<1x512xf32> -> vector<1x512xf32>
    %132 = arith.addf %129, %131 : vector<1x512xf32>
    %133 = vector.extract_strided_slice %132 {offsets = [0, 0], sizes = [1, 384], strides = [1, 1]} : vector<1x512xf32> to vector<1x384xf32>
    %134 = arith.negf %133 : vector<1x384xf32>
    %135 = math.exp %134 : vector<1x384xf32>
    %cst_46 = arith.constant 1.000000e+00 : f32
    %136 = vector.broadcast %cst_46 : f32 to vector<1x384xf32>
    %137 = arith.addf %136, %135 : vector<1x384xf32>
    %138 = arith.divf %136, %137 : vector<1x384xf32>
    %139 = vector.extract_strided_slice %138 {offsets = [0, 0], sizes = [1, 128], strides = [1, 1]} : vector<1x384xf32> to vector<1x128xf32>
    %140 = vector.extract_strided_slice %138 {offsets = [0, 128], sizes = [1, 128], strides = [1, 1]} : vector<1x384xf32> to vector<1x128xf32>
    %141 = vector.extract_strided_slice %138 {offsets = [0, 256], sizes = [1, 128], strides = [1, 1]} : vector<1x384xf32> to vector<1x128xf32>
    %142 = vector.extract_strided_slice %132 {offsets = [0, 384], sizes = [1, 128], strides = [1, 1]} : vector<1x512xf32> to vector<1x128xf32>
    %143 = math.tanh %142 : vector<1x128xf32>
    %144 = arith.mulf %140, %126 : vector<1x128xf32>
    %145 = arith.mulf %139, %143 : vector<1x128xf32>
    %146 = arith.addf %144, %145 : vector<1x128xf32>
    %147 = math.tanh %146 : vector<1x128xf32>
    %148 = arith.mulf %141, %147 : vector<1x128xf32>
    %c7 = arith.constant 7 : index
    %c0_47 = arith.constant 0 : index
    %149 = vector.load %arg11[%c7, %c0_47] : memref<8x512xf32, #tpu.memory_space<vmem>>, vector<1x512xf32>
    %c0_48 = arith.constant 0 : index
    %c0_49 = arith.constant 0 : index
    %150 = vector.load %arg2[%c0_48, %c0_49] : memref<128x512xf32, #tpu.memory_space<vmem>>, vector<128x512xf32>
    %cst_50 = arith.constant dense<0.000000e+00> : vector<1x512xf32>
    %151 = tpu.matmul %148, %150, %cst_50 {dimension_numbers = #tpu.dot_dimension_numbers<[1], [0], [0], [1], [0, 0, 1, 1], [], []>} : vector<1x128xf32>, vector<128x512xf32>, vector<1x512xf32> -> vector<1x512xf32>
    %152 = arith.addf %149, %151 : vector<1x512xf32>
    %153 = vector.extract_strided_slice %152 {offsets = [0, 0], sizes = [1, 384], strides = [1, 1]} : vector<1x512xf32> to vector<1x384xf32>
    %154 = arith.negf %153 : vector<1x384xf32>
    %155 = math.exp %154 : vector<1x384xf32>
    %cst_51 = arith.constant 1.000000e+00 : f32
    %156 = vector.broadcast %cst_51 : f32 to vector<1x384xf32>
    %157 = arith.addf %156, %155 : vector<1x384xf32>
    %158 = arith.divf %156, %157 : vector<1x384xf32>
    %159 = vector.extract_strided_slice %158 {offsets = [0, 0], sizes = [1, 128], strides = [1, 1]} : vector<1x384xf32> to vector<1x128xf32>
    %160 = vector.extract_strided_slice %158 {offsets = [0, 128], sizes = [1, 128], strides = [1, 1]} : vector<1x384xf32> to vector<1x128xf32>
    %161 = vector.extract_strided_slice %158 {offsets = [0, 256], sizes = [1, 128], strides = [1, 1]} : vector<1x384xf32> to vector<1x128xf32>
    %162 = vector.extract_strided_slice %152 {offsets = [0, 384], sizes = [1, 128], strides = [1, 1]} : vector<1x512xf32> to vector<1x128xf32>
    %163 = math.tanh %162 : vector<1x128xf32>
    %164 = arith.mulf %160, %146 : vector<1x128xf32>
    %165 = arith.mulf %159, %163 : vector<1x128xf32>
    %166 = arith.addf %164, %165 : vector<1x128xf32>
    %167 = math.tanh %166 : vector<1x128xf32>
    %168 = arith.mulf %161, %167 : vector<1x128xf32>
    %169 = tpu.concatenate %28, %48, %68, %88, %108, %128, %148, %168 in 0 : vector<1x128xf32>, vector<1x128xf32>, vector<1x128xf32>, vector<1x128xf32>, vector<1x128xf32>, vector<1x128xf32>, vector<1x128xf32>, vector<1x128xf32> -> vector<8x128xf32>
    %c0_52 = arith.constant 0 : index
    %c0_53 = arith.constant 0 : index
    %170 = vector.load %arg9[%c0_52, %c0_53] : memref<1x128xf32, #tpu.memory_space<vmem>>, vector<1x128xf32>
    tpu.vector_store %arg9[%c0_52, %c0_53], %168 {strides = array<i32>} : memref<1x128xf32, #tpu.memory_space<vmem>>, vector<1x128xf32>,
    %c0_54 = arith.constant 0 : index
    %c0_55 = arith.constant 0 : index
    %171 = vector.load %arg10[%c0_54, %c0_55] : memref<1x128xf32, #tpu.memory_space<vmem>>, vector<1x128xf32>
    tpu.vector_store %arg10[%c0_54, %c0_55], %166 {strides = array<i32>} : memref<1x128xf32, #tpu.memory_space<vmem>>, vector<1x128xf32>,
    %c0_56 = arith.constant 0 : index
    %c0_57 = arith.constant 0 : index
    %172 = vector.load %arg4[%c0_56, %c0_57] : memref<128x128xf32, #tpu.memory_space<vmem>>, vector<128x128xf32>
    %cst_58 = arith.constant dense<0.000000e+00> : vector<8x128xf32>
    %173 = tpu.matmul %169, %172, %cst_58 {dimension_numbers = #tpu.dot_dimension_numbers<[1], [0], [0], [1], [0, 0, 1, 1], [], []>} : vector<8x128xf32>, vector<128x128xf32>, vector<8x128xf32> -> vector<8x128xf32>
    %c0_59 = arith.constant 0 : index
    %c0_60 = arith.constant 0 : index
    %174 = vector.load %arg5[%c0_59, %c0_60] : memref<1x128xf32, #tpu.memory_space<vmem>>, vector<1x128xf32>
    %175 = vector.broadcast %174 : vector<1x128xf32> to vector<8x128xf32>
    %176 = arith.addf %173, %175 : vector<8x128xf32>
    %cst_61 = arith.constant dense<0xFF800000> : vector<8xf32>
    %177 = vector.multi_reduction <maximumf>, %176, %cst_61 [1] : vector<8x128xf32> to vector<8xf32>
    %178 = vector.shape_cast %177 : vector<8xf32> to vector<8x1xf32>
    %179 = vector.broadcast %178 : vector<8x1xf32> to vector<8x128xf32>
    %180 = arith.subf %176, %179 : vector<8x128xf32>
    %181 = math.exp %180 : vector<8x128xf32>
    %cst_62 = arith.constant dense<0.000000e+00> : vector<8xf32>
    %182 = vector.multi_reduction <add>, %181, %cst_62 [1] : vector<8x128xf32> to vector<8xf32>
    %183 = vector.shape_cast %182 : vector<8xf32> to vector<8x1xf32>
    %184 = math.log %183 : vector<8x1xf32>
    %185 = vector.broadcast %184 : vector<8x1xf32> to vector<8x128xf32>
    %186 = arith.subf %180, %185 : vector<8x128xf32>
    %c0_63 = arith.constant 0 : index
    %c0_64 = arith.constant 0 : index
    %187 = vector.load %arg8[%c0_63, %c0_64] : memref<8x128xf32, #tpu.memory_space<vmem>>, vector<8x128xf32>
    tpu.vector_store %arg8[%c0_63, %c0_64], %186 {strides = array<i32>} : memref<8x128xf32, #tpu.memory_space<vmem>>, vector<8x128xf32>,
    return
  }
}

</mosaic_0001>

<llo_original>
// kernel: tpu_custom_call.1
$region0: #{tpu_custom_call.1}
  #allocation0 [shape = 'u32[]', space=smem, size = 0x4, offset = 0x4, fixed_abs, tag = 'smem constant byte address 0x4 - core index']
  #allocation1 [shape = 'u32[144,128]{1,0:T(1,128)}', space=vmem, size = 0x12000, scoped, tag = 'internal scratch']
  #allocation2 [shape = 'f32[8,512]{1,0:T(8,128)}', space=vmem, size = 0x4000, scoped, tag = 'scratch operand']
  #allocation3 [shape = 'f32[8,128]{1,0:T(8,128)}', space=vmem, size = 0x1000, scoped, tag = 'scratch operand']
  %s0 = inlined_call_operand.hbm [shape: f32[8,128], index: 0, kind: input, shape index: {}]
  %s1 = inlined_call_operand.hbm [shape: f32[128,512], index: 1, kind: input, shape index: {}]
  %s2 = inlined_call_operand.hbm [shape: f32[128,512], index: 2, kind: input, shape index: {}]
  %s3 = inlined_call_operand.vmem [shape: f32[1,512], index: 3, kind: input, shape index: {}]
  %s4 = inlined_call_operand.hbm [shape: f32[128,128], index: 4, kind: input, shape index: {}]
  %s5 = inlined_call_operand.vmem [shape: f32[1,128], index: 5, kind: input, shape index: {}]
  %s6 = inlined_call_operand.vmem [shape: f32[1,128], index: 6, kind: input, shape index: {}]
  %s7 = inlined_call_operand.vmem [shape: f32[1,128], index: 7, kind: input, shape index: {}]
  %s8 = inlined_call_operand.hbm [shape: f32[8,128], index: 8, kind: output, shape index: {0}]
  %s9 = inlined_call_operand.hbm [shape: f32[1,128], index: 9, kind: output, shape index: {1}]
  %s10 = inlined_call_operand.hbm [shape: f32[1,128], index: 10, kind: output, shape index: {2}]
  %11 = xla_tuple %s8, %s9, %s10
  %s12 = sld [smem:[#allocation0]]
  $region74: #{tpu_custom_call.1} parent=0
    _
  %s14 = ssub.s32 1, %s12
  %s15 = scalar_select 0, %s14, %s12
  $region1: #{tpu_custom_call.1} parent=0
    #allocation4 [shape = 'u8[4096]{0}', space=vmem, size = 0x1000, scoped, tag = 'input window, operand 0, single buffered']
    #allocation5 [shape = 's32[1]{0}', space=sflag, size = 0x4, scoped, tag = 'scoped memory for tpu_custom_call.1']
    #allocation6 [shape = 's32[1]{0}', space=sflag, size = 0x4, scoped, tag = 'scoped memory for tpu_custom_call.1']
    #allocation7 [shape = 'u8[262144]{0}', space=vmem, size = 0x40000, scoped, tag = 'input window, operand 1, single buffered']
    #allocation8 [shape = 's32[1]{0}', space=sflag, size = 0x4, scoped, tag = 'scoped memory for tpu_custom_call.1']
    #allocation9 [shape = 'u8[262144]{0}', space=vmem, size = 0x40000, scoped, tag = 'input window, operand 2, single buffered']
    #allocation10 [shape = 'u8[65536]{0}', space=vmem, size = 0x10000, scoped, tag = 'input window, operand 4, single buffered']
    #allocation11 [shape = 's32[1]{0}', space=sflag, size = 0x4, scoped, tag = 'scoped memory for tpu_custom_call.1']
    #allocation12 [shape = 'u8[4096]{0}', space=vmem, size = 0x1000, scoped, tag = 'output window, operand 0, single buffered']
    #allocation13 [shape = 'u8[512]{0}', space=vmem, size = 0x400, scoped, tag = 'output window, operand 1, single buffered']
    #allocation14 [shape = 's32[1]{0}', space=sflag, size = 0x4, scoped, tag = 'scoped memory for tpu_custom_call.1']
    #allocation15 [shape = 'u8[512]{0}', space=vmem, size = 0x400, scoped, tag = 'output window, operand 2, single buffered']
    %16 = vsyncpa [#allocation5], 0
    %17 = vsyncpa [#allocation8], 0
    %18 = vsyncpa [#allocation11], 0
    %19 = vsyncpa [#allocation6], 0
    %20 = vsyncpa [#allocation14], 0
    // Predicated region
    $region2: #{tpu_custom_call.1} parent=1 // pred_check
      _
    $region3: #{tpu_custom_call.1} parent=1 // pred_check_branch
      %22 = sbr.rel (0) target = $region5
    $region4: #{tpu_custom_call.1} parent=1 // pred_region
      %s24 = ssub.s32 128, 128
      %25 = vsyncadd [#allocation5], %s24
      %s27 = sshll.u32 [#allocation4], 4
      %s28 = int_to_ptr.vmem [resolvable:$true] %s27
      %30 = dma.hbm_to_vmem [thread:$0]  %s0, 128, %s28, [#allocation5]
    $region5: #{tpu_custom_call.1} parent=1 // pred_fallthru
      _
    // Predicated region
    $region6: #{tpu_custom_call.1} parent=1 // pred_check
      _
    $region7: #{tpu_custom_call.1} parent=1 // pred_check_branch
      %32 = sbr.rel (0) target = $region9
    $region8: #{tpu_custom_call.1} parent=1 // pred_region
      %s34 = ssub.s32 8192, 8192
      %35 = vsyncadd [#allocation8], %s34
      %s36 = sshll.u32 [#allocation7], 4
      %s37 = int_to_ptr.vmem [resolvable:$true] %s36
      %42 = dma.hbm_to_vmem [thread:$0]  %s1, 8192, %s37, [#allocation8], 512, 512, 32
    $region9: #{tpu_custom_call.1} parent=1 // pred_fallthru
      _
    // Predicated region
    $region10: #{tpu_custom_call.1} parent=1 // pred_check
      _
    $region11: #{tpu_custom_call.1} parent=1 // pred_check_branch
      %44 = sbr.rel (0) target = $region13
    $region12: #{tpu_custom_call.1} parent=1 // pred_region
      %s46 = ssub.s32 8192, 8192
      %47 = vsyncadd [#allocation8], %s46
      %s48 = sshll.u32 [#allocation9], 4
      %s49 = int_to_ptr.vmem [resolvable:$true] %s48
      %54 = dma.hbm_to_vmem [thread:$0]  %s2, 8192, %s49, [#allocation8], 512, 512, 32
    $region13: #{tpu_custom_call.1} parent=1 // pred_fallthru
      _
    // Predicated region
    $region14: #{tpu_custom_call.1} parent=1 // pred_check
      _
    $region15: #{tpu_custom_call.1} parent=1 // pred_check_branch
      %56 = sbr.rel (0) target = $region17
    $region16: #{tpu_custom_call.1} parent=1 // pred_region
      _
    $region17: #{tpu_custom_call.1} parent=1 // pred_fallthru
      _
    // Predicated region
    $region18: #{tpu_custom_call.1} parent=1 // pred_check
      _
    $region19: #{tpu_custom_call.1} parent=1 // pred_check_branch
      %58 = sbr.rel (0) target = $region21
    $region20: #{tpu_custom_call.1} parent=1 // pred_region
      %s60 = ssub.s32 2048, 2048
      %61 = vsyncadd [#allocation11], %s60
      %s62 = sshll.u32 [#allocation10], 4
      %s63 = int_to_ptr.vmem [resolvable:$true] %s62
      %68 = dma.hbm_to_vmem [thread:$0]  %s4, 2048, %s63, [#allocation11], 128, 128, 8
    $region21: #{tpu_custom_call.1} parent=1 // pred_fallthru
      _
    // Predicated region
    $region22: #{tpu_custom_call.1} parent=1 // pred_check
      _
    $region23: #{tpu_custom_call.1} parent=1 // pred_check_branch
      %70 = sbr.rel (0) target = $region25
    $region24: #{tpu_custom_call.1} parent=1 // pred_region
      _
    $region25: #{tpu_custom_call.1} parent=1 // pred_fallthru
      _
    // Predicated region
    $region26: #{tpu_custom_call.1} parent=1 // pred_check
      _
    $region27: #{tpu_custom_call.1} parent=1 // pred_check_branch
      %72 = sbr.rel (0) target = $region29
    $region28: #{tpu_custom_call.1} parent=1 // pred_region
      _
    $region29: #{tpu_custom_call.1} parent=1 // pred_fallthru
      _
    // Predicated region
    $region30: #{tpu_custom_call.1} parent=1 // pred_check
      _
    $region31: #{tpu_custom_call.1} parent=1 // pred_check_branch
      %74 = sbr.rel (0) target = $region33
    $region32: #{tpu_custom_call.1} parent=1 // pred_region
      _
    $region33: #{tpu_custom_call.1} parent=1 // pred_fallthru
      _
    // Predicated region
    $region34: #{tpu_custom_call.1} parent=1 // pred_check
      _
    $region35: #{tpu_custom_call.1} parent=1 // pred_check_branch
      %76 = sbr.rel (0) target = $region37
    $region36: #{tpu_custom_call.1} parent=1 // pred_region
      %77 = dma.done [#allocation5], 128
    $region37: #{tpu_custom_call.1} parent=1 // pred_fallthru
      _
    // Predicated region
    $region38: #{tpu_custom_call.1} parent=1 // pred_check
      _
    $region39: #{tpu_custom_call.1} parent=1 // pred_check_branch
      %79 = sbr.rel (0) target = $region41
    $region40: #{tpu_custom_call.1} parent=1 // pred_region
      %80 = dma.done [#allocation8], 8192
    $region41: #{tpu_custom_call.1} parent=1 // pred_fallthru
      _
    // Predicated region
    $region42: #{tpu_custom_call.1} parent=1 // pred_check
      _
    $region43: #{tpu_custom_call.1} parent=1 // pred_check_branch
      %82 = sbr.rel (0) target = $region45
    $region44: #{tpu_custom_call.1} parent=1 // pred_region
      %83 = dma.done [#allocation8], 8192
    $region45: #{tpu_custom_call.1} parent=1 // pred_fallthru
      _
    // Predicated region
    $region46: #{tpu_custom_call.1} parent=1 // pred_check
      _
    $region47: #{tpu_custom_call.1} parent=1 // pred_check_branch
      %85 = sbr.rel (0) target = $region49
    $region48: #{tpu_custom_call.1} parent=1 // pred_region
      %86 = dma.done [#allocation11], 2048
    $region49: #{tpu_custom_call.1} parent=1 // pred_fallthru
      _
    %v87 = vld [vmem:[#allocation4] sm:$0xff]
    %v88 = vld [vmem:[#allocation7] sm:$0xff]
    %v89 = vld [vmem:[#allocation7 + $0x8] sm:$0xff]
    %v90 = vld [vmem:[#allocation7 + $0x10] sm:$0xff]
    %v91 = vld [vmem:[#allocation7 + $0x18] sm:$0xff]
    %v92 = vld [vmem:[#allocation7 + $0x20] sm:$0xff]
    %v93 = vld [vmem:[#allocation7 + $0x28] sm:$0xff]
    %v94 = vld [vmem:[#allocation7 + $0x30] sm:$0xff]
    %v95 = vld [vmem:[#allocation7 + $0x38] sm:$0xff]
    %v96 = vld [vmem:[#allocation7 + $0x40] sm:$0xff]
    %v97 = vld [vmem:[#allocation7 + $0x48] sm:$0xff]
    %v98 = vld [vmem:[#allocation7 + $0x50] sm:$0xff]
    %v99 = vld [vmem:[#allocation7 + $0x58] sm:$0xff]
    %v100 = vld [vmem:[#allocation7 + $0x60] sm:$0xff]
    %v101 = vld [vmem:[#allocation7 + $0x68] sm:$0xff]
    %v102 = vld [vmem:[#allocation7 + $0x70] sm:$0xff]
    %v103 = vld [vmem:[#allocation7 + $0x78] sm:$0xff]
    %v104 = vld [vmem:[#allocation7 + $0x80] sm:$0xff]
    %v105 = vld [vmem:[#allocation7 + $0x88] sm:$0xff]
    %v106 = vld [vmem:[#allocation7 + $0x90] sm:$0xff]
    %v107 = vld [vmem:[#allocation7 + $0x98] sm:$0xff]
    %v108 = vld [vmem:[#allocation7 + $0xa0] sm:$0xff]
    %v109 = vld [vmem:[#allocation7 + $0xa8] sm:$0xff]
    %v110 = vld [vmem:[#allocation7 + $0xb0] sm:$0xff]
    %v111 = vld [vmem:[#allocation7 + $0xb8] sm:$0xff]
    %v112 = vld [vmem:[#allocation7 + $0xc0] sm:$0xff]
    %v113 = vld [vmem:[#allocation7 + $0xc8] sm:$0xff]
    %v114 = vld [vmem:[#allocation7 + $0xd0] sm:$0xff]
    %v115 = vld [vmem:[#allocation7 + $0xd8] sm:$0xff]
    %v116 = vld [vmem:[#allocation7 + $0xe0] sm:$0xff]
    %v117 = vld [vmem:[#allocation7 + $0xe8] sm:$0xff]
    %v118 = vld [vmem:[#allocation7 + $0xf0] sm:$0xff]
    %v119 = vld [vmem:[#allocation7 + $0xf8] sm:$0xff]
    %v120 = vld [vmem:[#allocation7 + $0x100] sm:$0xff]
    %v121 = vld [vmem:[#allocation7 + $0x108] sm:$0xff]
    %v122 = vld [vmem:[#allocation7 + $0x110] sm:$0xff]
    %v123 = vld [vmem:[#allocation7 + $0x118] sm:$0xff]
    %v124 = vld [vmem:[#allocation7 + $0x120] sm:$0xff]
    %v125 = vld [vmem:[#allocation7 + $0x128] sm:$0xff]
    %v126 = vld [vmem:[#allocation7 + $0x130] sm:$0xff]
    %v127 = vld [vmem:[#allocation7 + $0x138] sm:$0xff]
    %v128 = vld [vmem:[#allocation7 + $0x140] sm:$0xff]
    %v129 = vld [vmem:[#allocation7 + $0x148] sm:$0xff]
    %v130 = vld [vmem:[#allocation7 + $0x150] sm:$0xff]
    %v131 = vld [vmem:[#allocation7 + $0x158] sm:$0xff]
    %v132 = vld [vmem:[#allocation7 + $0x160] sm:$0xff]
    %v133 = vld [vmem:[#allocation7 + $0x168] sm:$0xff]
    %v134 = vld [vmem:[#allocation7 + $0x170] sm:$0xff]
    %v135 = vld [vmem:[#allocation7 + $0x178] sm:$0xff]
    %v136 = vld [vmem:[#allocation7 + $0x180] sm:$0xff]
    %v137 = vld [vmem:[#allocation7 + $0x188] sm:$0xff]
    %v138 = vld [vmem:[#allocation7 + $0x190] sm:$0xff]
    %v139 = vld [vmem:[#allocation7 + $0x198] sm:$0xff]
    %v140 = vld [vmem:[#allocation7 + $0x1a0] sm:$0xff]
    %v141 = vld [vmem:[#allocation7 + $0x1a8] sm:$0xff]
    %v142 = vld [vmem:[#allocation7 + $0x1b0] sm:$0xff]
    %v143 = vld [vmem:[#allocation7 + $0x1b8] sm:$0xff]
    %v144 = vld [vmem:[#allocation7 + $0x1c0] sm:$0xff]
    %v145 = vld [vmem:[#allocation7 + $0x1c8] sm:$0xff]
    %v146 = vld [vmem:[#allocation7 + $0x1d0] sm:$0xff]
    %v147 = vld [vmem:[#allocation7 + $0x1d8] sm:$0xff]
    %v148 = vld [vmem:[#allocation7 + $0x1e0] sm:$0xff]
    %v149 = vld [vmem:[#allocation7 + $0x1e8] sm:$0xff]
    %v150 = vld [vmem:[#allocation7 + $0x1f0] sm:$0xff]
    %v151 = vld [vmem:[#allocation7 + $0x1f8] sm:$0xff]
    %v152 = vld [vmem:[%s3] sm:$0xf]
    %v154 = vlaneseq
    %v155 = vshrl.u32 %v154, 7
    %v156 = vsub.s32 0, %v155
    %v157 = vrot.slane %v152, %v156
    %v158 = vlaneseq
    %v159 = vshrl.u32 %v158, 7
    %v160 = vsub.s32 1, %v159
    %v161 = vrot.slane %v152, %v160
    %v162 = vlaneseq
    %v163 = vshrl.u32 %v162, 7
    %v164 = vsub.s32 2, %v163
    %v165 = vrot.slane %v152, %v164
    %v166 = vlaneseq
    %v167 = vshrl.u32 %v166, 7
    %v168 = vsub.s32 3, %v167
    %v169 = vrot.slane %v152, %v168
    %174 = vmatprep.subr.mxu0 %v89
    %175 = vmatpush1.msra.mxu0 %v88
    %176 = vmatprep.subr.mxu0 %v93
    %177 = vmatpush1.msra.mxu0 %v92
    %178 = vmatprep.subr.mxu0 %v97
    %179 = vmatpush1.msra.mxu0 %v96
    %180 = vmatprep.subr.mxu0 %v101
    %181 = vmatpush1.msra.mxu0 %v100
    %182 = vmatprep.subr.mxu0 %v105
    %183 = vmatpush1.msra.mxu0 %v104
    %184 = vmatprep.subr.mxu0 %v109
    %185 = vmatpush1.msra.mxu0 %v108
    %186 = vmatprep.subr.mxu0 %v113
    %187 = vmatpush1.msra.mxu0 %v112
    %188 = vmatprep.subr.mxu0 %v117
    %189 = vmatpush1.msra.mxu0 %v116
    %190 = vmatprep.subr.mxu0 %v121
    %191 = vmatpush1.msra.mxu0 %v120
    %192 = vmatprep.subr.mxu0 %v125
    %193 = vmatpush1.msra.mxu0 %v124
    %194 = vmatprep.subr.mxu0 %v129
    %195 = vmatpush1.msra.mxu0 %v128
    %196 = vmatprep.subr.mxu0 %v133
    %197 = vmatpush1.msra.mxu0 %v132
    %198 = vmatprep.subr.mxu0 %v137
    %199 = vmatpush1.msra.mxu0 %v136
    %200 = vmatprep.subr.mxu0 %v141
    %201 = vmatpush1.msra.mxu0 %v140
    %202 = vmatprep.subr.mxu0 %v145
    %203 = vmatpush1.msra.mxu0 %v144
    %204 = vmatprep.subr.mxu0 %v149
    %205 = vmatpush1.msra.mxu0 %v148
    %206 = vmatprep.subr.mxu0 0.0
    %207 = vmatpush1.msra.mxu0 0.0
    %208 = vmatprep.subr.mxu0 0.0
    %209 = vmatpush1.msra.mxu0 0.0
    %210 = vmatprep.subr.mxu0 0.0
    %211 = vmatpush1.msra.mxu0 0.0
    %212 = vmatprep.subr.mxu0 0.0
    %213 = vmatpush1.msra.mxu0 0.0
    %214 = vmatprep.subr.mxu0 0.0
    %215 = vmatpush1.msra.mxu0 0.0
    %216 = vmatprep.subr.mxu0 0.0
    %217 = vmatpush1.msra.mxu0 0.0
    %218 = vmatprep.subr.mxu0 0.0
    %219 = vmatpush1.msra.mxu0 0.0
    %220 = vmatprep.subr.mxu0 0.0
    %221 = vmatpush1.msra.mxu0 0.0
    %222 = vmatprep.subr.mxu0 0.0
    %223 = vmatpush1.msra.mxu0 0.0
    %224 = vmatprep.subr.mxu0 0.0
    %225 = vmatpush1.msra.mxu0 0.0
    %226 = vmatprep.subr.mxu0 0.0
    %227 = vmatpush1.msra.mxu0 0.0
    %228 = vmatprep.subr.mxu0 0.0
    %229 = vmatpush1.msra.mxu0 0.0
    %230 = vmatprep.subr.mxu0 0.0
    %231 = vmatpush1.msra.mxu0 0.0
    %232 = vmatprep.subr.mxu0 0.0
    %233 = vmatpush1.msra.mxu0 0.0
    %234 = vmatprep.subr.mxu0 0.0
    %235 = vmatpush1.msra.mxu0 0.0
    %236 = vmatprep.subr.mxu0 0.0
    %237 = vmatpush1.msra.mxu0 0.0
    %238 = vmatprep.mubr.f32.mxu0 0.0
    %239 = vmatmul.mubr.f32.gmra.mrb[0].mxu0 %v87
    %v240 = vpop.f32.mrb[0].mxu0
    %v241 = vadd.f32 %v157, %v240
    %v242 = vpop.f32.mrb[0].mxu0
    %v243 = vadd.f32 %v161, %v242
    %244 = vdwg.mxu0
    %245 = vmatprep.subr.mxu0 %v91
    %246 = vmatpush1.msra.mxu0 %v90
    %247 = vmatprep.subr.mxu0 %v95
    %248 = vmatpush1.msra.mxu0 %v94
    %249 = vmatprep.subr.mxu0 %v99
    %250 = vmatpush1.msra.mxu0 %v98
    %251 = vmatprep.subr.mxu0 %v103
    %252 = vmatpush1.msra.mxu0 %v102
    %253 = vmatprep.subr.mxu0 %v107
    %254 = vmatpush1.msra.mxu0 %v106
    %255 = vmatprep.subr.mxu0 %v111
    %256 = vmatpush1.msra.mxu0 %v110
    %257 = vmatprep.subr.mxu0 %v115
    %258 = vmatpush1.msra.mxu0 %v114
    %259 = vmatprep.subr.mxu0 %v119
    %260 = vmatpush1.msra.mxu0 %v118
    %261 = vmatprep.subr.mxu0 %v123
    %262 = vmatpush1.msra.mxu0 %v122
    %263 = vmatprep.subr.mxu0 %v127
    %264 = vmatpush1.msra.mxu0 %v126
    %265 = vmatprep.subr.mxu0 %v131
    %266 = vmatpush1.msra.mxu0 %v130
    %267 = vmatprep.subr.mxu0 %v135
    %268 = vmatpush1.msra.mxu0 %v134
    %269 = vmatprep.subr.mxu0 %v139
    %270 = vmatpush1.msra.mxu0 %v138
    %271 = vmatprep.subr.mxu0 %v143
    %272 = vmatpush1.msra.mxu0 %v142
    %273 = vmatprep.subr.mxu0 %v147
    %274 = vmatpush1.msra.mxu0 %v146
    %275 = vmatprep.subr.mxu0 %v151
    %276 = vmatpush1.msra.mxu0 %v150
    %277 = vmatprep.subr.mxu0 0.0
    %278 = vmatpush1.msra.mxu0 0.0
    %279 = vmatprep.subr.mxu0 0.0
    %280 = vmatpush1.msra.mxu0 0.0
    %281 = vmatprep.subr.mxu0 0.0
    %282 = vmatpush1.msra.mxu0 0.0
    %283 = vmatprep.subr.mxu0 0.0
    %284 = vmatpush1.msra.mxu0 0.0
    %285 = vmatprep.subr.mxu0 0.0
    %286 = vmatpush1.msra.mxu0 0.0
    %287 = vmatprep.subr.mxu0 0.0
    %288 = vmatpush1.msra.mxu0 0.0
    %289 = vmatprep.subr.mxu0 0.0
    %290 = vmatpush1.msra.mxu0 0.0
    %291 = vmatprep.subr.mxu0 0.0
    %292 = vmatpush1.msra.mxu0 0.0
    %293 = vmatprep.subr.mxu0 0.0
    %294 = vmatpush1.msra.mxu0 0.0
    %295 = vmatprep.subr.mxu0 0.0
    %296 = vmatpush1.msra.mxu0 0.0
    %297 = vmatprep.subr.mxu0 0.0
    %298 = vmatpush1.msra.mxu0 0.0
    %299 = vmatprep.subr.mxu0 0.0
    %300 = vmatpush1.msra.mxu0 0.0
    %301 = vmatprep.subr.mxu0 0.0
    %302 = vmatpush1.msra.mxu0 0.0
    %303 = vmatprep.subr.mxu0 0.0
    %304 = vmatpush1.msra.mxu0 0.0
    %305 = vmatprep.subr.mxu0 0.0
    %306 = vmatpush1.msra.mxu0 0.0
    %307 = vmatprep.subr.mxu0 0.0
    %308 = vmatpush1.msra.mxu0 0.0
    %309 = vmatprep.mubr.f32.mxu0 0.0
    %310 = vmatmul.mubr.f32.gmra.mrb[0].mxu0 %v87
    %v311 = vpop.f32.mrb[0].mxu0
    %v312 = vadd.f32 %v165, %v311
    %v313 = vpop.f32.mrb[0].mxu0
    %v314 = vadd.f32 %v169, %v313
    %315 = vdwg.mxu0
    %316 = vst [vmem:[#allocation2] sm:$0xff] %v241
    %317 = vst [vmem:[#allocation2 + $0x8] sm:$0xff] %v243
    %318 = vst [vmem:[#allocation2 + $0x10] sm:$0xff] %v312
    %319 = vst [vmem:[#allocation2 + $0x18] sm:$0xff] %v314
    %v320 = vld [vmem:[%s6] sm:$0x1]
    %v321 = vld [vmem:[%s7] sm:$0x1]
    %v322 = vld [vmem:[#allocation2] ss:$8 sm:$0xf]
    %v323 = vld [vmem:[#allocation9] sm:$0xff]
    %v324 = vld [vmem:[#allocation9 + $0x8] sm:$0xff]
    %v325 = vld [vmem:[#allocation9 + $0x10] sm:$0xff]
    %v326 = vld [vmem:[#allocation9 + $0x18] sm:$0xff]
    %v327 = vld [vmem:[#allocation9 + $0x20] sm:$0xff]
    %v328 = vld [vmem:[#allocation9 + $0x28] sm:$0xff]
    %v329 = vld [vmem:[#allocation9 + $0x30] sm:$0xff]
    %v330 = vld [vmem:[#allocation9 + $0x38] sm:$0xff]
    %v331 = vld [vmem:[#allocation9 + $0x40] sm:$0xff]
    %v332 = vld [vmem:[#allocation9 + $0x48] sm:$0xff]
    %v333 = vld [vmem:[#allocation9 + $0x50] sm:$0xff]
    %v334 = vld [vmem:[#allocation9 + $0x58] sm:$0xff]
    %v335 = vld [vmem:[#allocation9 + $0x60] sm:$0xff]
    %v336 = vld [vmem:[#allocation9 + $0x68] sm:$0xff]
    %v337 = vld [vmem:[#allocation9 + $0x70] sm:$0xff]
    %v338 = vld [vmem:[#allocation9 + $0x78] sm:$0xff]
    %v339 = vld [vmem:[#allocation9 + $0x80] sm:$0xff]
    %v340 = vld [vmem:[#allocation9 + $0x88] sm:$0xff]
    %v341 = vld [vmem:[#allocation9 + $0x90] sm:$0xff]
    %v342 = vld [vmem:[#allocation9 + $0x98] sm:$0xff]
    %v343 = vld [vmem:[#allocation9 + $0xa0] sm:$0xff]
    %v344 = vld [vmem:[#allocation9 + $0xa8] sm:$0xff]
    %v345 = vld [vmem:[#allocation9 + $0xb0] sm:$0xff]
    %v346 = vld [vmem:[#allocation9 + $0xb8] sm:$0xff]
    %v347 = vld [vmem:[#allocation9 + $0xc0] sm:$0xff]
    %v348 = vld [vmem:[#allocation9 + $0xc8] sm:$0xff]
    %v349 = vld [vmem:[#allocation9 + $0xd0] sm:$0xff]
    %v350 = vld [vmem:[#allocation9 + $0xd8] sm:$0xff]
    %v351 = vld [vmem:[#allocation9 + $0xe0] sm:$0xff]
    %v352 = vld [vmem:[#allocation9 + $0xe8] sm:$0xff]
    %v353 = vld [vmem:[#allocation9 + $0xf0] sm:$0xff]
    %v354 = vld [vmem:[#allocation9 + $0xf8] sm:$0xff]
    %v355 = vld [vmem:[#allocation9 + $0x100] sm:$0xff]
    %v356 = vld [vmem:[#allocation9 + $0x108] sm:$0xff]
    %v357 = vld [vmem:[#allocation9 + $0x110] sm:$0xff]
    %v358 = vld [vmem:[#allocation9 + $0x118] sm:$0xff]
    %v359 = vld [vmem:[#allocation9 + $0x120] sm:$0xff]
    %v360 = vld [vmem:[#allocation9 + $0x128] sm:$0xff]
    %v361 = vld [vmem:[#allocation9 + $0x130] sm:$0xff]
    %v362 = vld [vmem:[#allocation9 + $0x138] sm:$0xff]
    %v363 = vld [vmem:[#allocation9 + $0x140] sm:$0xff]
    %v364 = vld [vmem:[#allocation9 + $0x148] sm:$0xff]
    %v365 = vld [vmem:[#allocation9 + $0x150] sm:$0xff]
    %v366 = vld [vmem:[#allocation9 + $0x158] sm:$0xff]
    %v367 = vld [vmem:[#allocation9 + $0x160] sm:$0xff]
    %v368 = vld [vmem:[#allocation9 + $0x168] sm:$0xff]
    %v369 = vld [vmem:[#allocation9 + $0x170] sm:$0xff]
    %v370 = vld [vmem:[#allocation9 + $0x178] sm:$0xff]
    %v371 = vld [vmem:[#allocation9 + $0x180] sm:$0xff]
    %v372 = vld [vmem:[#allocation9 + $0x188] sm:$0xff]
    %v373 = vld [vmem:[#allocation9 + $0x190] sm:$0xff]
    %v374 = vld [vmem:[#allocation9 + $0x198] sm:$0xff]
    %v375 = vld [vmem:[#allocation9 + $0x1a0] sm:$0xff]
    %v376 = vld [vmem:[#allocation9 + $0x1a8] sm:$0xff]
    %v377 = vld [vmem:[#allocation9 + $0x1b0] sm:$0xff]
    %v378 = vld [vmem:[#allocation9 + $0x1b8] sm:$0xff]
    %v379 = vld [vmem:[#allocation9 + $0x1c0] sm:$0xff]
    %v380 = vld [vmem:[#allocation9 + $0x1c8] sm:$0xff]
    %v381 = vld [vmem:[#allocation9 + $0x1d0] sm:$0xff]
    %v382 = vld [vmem:[#allocation9 + $0x1d8] sm:$0xff]
    %v383 = vld [vmem:[#allocation9 + $0x1e0] sm:$0xff]
    %v384 = vld [vmem:[#allocation9 + $0x1e8] sm:$0xff]
    %v385 = vld [vmem:[#allocation9 + $0x1f0] sm:$0xff]
    %v386 = vld [vmem:[#allocation9 + $0x1f8] sm:$0xff]
    %387 = vmatprep.subr.mxu0 %v324
    %388 = vmatpush1.msra.mxu0 %v323
    %389 = vmatprep.subr.mxu0 %v328
    %390 = vmatpush1.msra.mxu0 %v327
    %391 = vmatprep.subr.mxu0 %v332
    %392 = vmatpush1.msra.mxu0 %v331
    %393 = vmatprep.subr.mxu0 %v336
    %394 = vmatpush1.msra.mxu0 %v335
    %395 = vmatprep.subr.mxu0 %v340
    %396 = vmatpush1.msra.mxu0 %v339
    %397 = vmatprep.subr.mxu0 %v344
    %398 = vmatpush1.msra.mxu0 %v343
    %399 = vmatprep.subr.mxu0 %v348
    %400 = vmatpush1.msra.mxu0 %v347
    %401 = vmatprep.subr.mxu0 %v352
    %402 = vmatpush1.msra.mxu0 %v351
    %403 = vmatprep.subr.mxu0 %v356
    %404 = vmatpush1.msra.mxu0 %v355
    %405 = vmatprep.subr.mxu0 %v360
    %406 = vmatpush1.msra.mxu0 %v359
    %407 = vmatprep.subr.mxu0 %v364
    %408 = vmatpush1.msra.mxu0 %v363
    %409 = vmatprep.subr.mxu0 %v368
    %410 = vmatpush1.msra.mxu0 %v367
    %411 = vmatprep.subr.mxu0 %v372
    %412 = vmatpush1.msra.mxu0 %v371
    %413 = vmatprep.subr.mxu0 %v376
    %414 = vmatpush1.msra.mxu0 %v375
    %415 = vmatprep.subr.mxu0 %v380
    %416 = vmatpush1.msra.mxu0 %v379
    %417 = vmatprep.subr.mxu0 %v384
    %418 = vmatpush1.msra.mxu0 %v383
    %419 = vmatprep.subr.mxu0 0.0
    %420 = vmatpush1.msra.mxu0 0.0
    %421 = vmatprep.subr.mxu0 0.0
    %422 = vmatpush1.msra.mxu0 0.0
    %423 = vmatprep.subr.mxu0 0.0
    %424 = vmatpush1.msra.mxu0 0.0
    %425 = vmatprep.subr.mxu0 0.0
    %426 = vmatpush1.msra.mxu0 0.0
    %427 = vmatprep.subr.mxu0 0.0
    %428 = vmatpush1.msra.mxu0 0.0
    %429 = vmatprep.subr.mxu0 0.0
    %430 = vmatpush1.msra.mxu0 0.0
    %431 = vmatprep.subr.mxu0 0.0
    %432 = vmatpush1.msra.mxu0 0.0
    %433 = vmatprep.subr.mxu0 0.0
    %434 = vmatpush1.msra.mxu0 0.0
    %435 = vmatprep.subr.mxu0 0.0
    %436 = vmatpush1.msra.mxu0 0.0
    %437 = vmatprep.subr.mxu0 0.0
    %438 = vmatpush1.msra.mxu0 0.0
    %439 = vmatprep.subr.mxu0 0.0
    %440 = vmatpush1.msra.mxu0 0.0
    %441 = vmatprep.subr.mxu0 0.0
    %442 = vmatpush1.msra.mxu0 0.0
    %443 = vmatprep.subr.mxu0 0.0
    %444 = vmatpush1.msra.mxu0 0.0
    %445 = vmatprep.subr.mxu0 0.0
    %446 = vmatpush1.msra.mxu0 0.0
    %447 = vmatprep.subr.mxu0 0.0
    %448 = vmatpush1.msra.mxu0 0.0
    %449 = vmatprep.subr.mxu0 0.0
    %450 = vmatpush1.msra.mxu0 0.0
    %451 = vmatprep.mubr.f32.mxu0 0.0
    %452 = vmatmul.mubr.f32.gmra.mrb[0].mxu0 %v320
    %v453 = vpop.f32.mrb[0].mxu0
    %v454 = vadd.f32 0.0, %v453
    %v455 = vpop.f32.mrb[0].mxu0
    %v456 = vadd.f32 0.0, %v455
    %457 = vdwg.mxu0
    %458 = vmatprep.subr.mxu0 %v326
    %459 = vmatpush1.msra.mxu0 %v325
    %460 = vmatprep.subr.mxu0 %v330
    %461 = vmatpush1.msra.mxu0 %v329
    %462 = vmatprep.subr.mxu0 %v334
    %463 = vmatpush1.msra.mxu0 %v333
    %464 = vmatprep.subr.mxu0 %v338
    %465 = vmatpush1.msra.mxu0 %v337
    %466 = vmatprep.subr.mxu0 %v342
    %467 = vmatpush1.msra.mxu0 %v341
    %468 = vmatprep.subr.mxu0 %v346
    %469 = vmatpush1.msra.mxu0 %v345
    %470 = vmatprep.subr.mxu0 %v350
    %471 = vmatpush1.msra.mxu0 %v349
    %472 = vmatprep.subr.mxu0 %v354
    %473 = vmatpush1.msra.mxu0 %v353
    %474 = vmatprep.subr.mxu0 %v358
    %475 = vmatpush1.msra.mxu0 %v357
    %476 = vmatprep.subr.mxu0 %v362
    %477 = vmatpush1.msra.mxu0 %v361
    %478 = vmatprep.subr.mxu0 %v366
    %479 = vmatpush1.msra.mxu0 %v365
    %480 = vmatprep.subr.mxu0 %v370
    %481 = vmatpush1.msra.mxu0 %v369
    %482 = vmatprep.subr.mxu0 %v374
    %483 = vmatpush1.msra.mxu0 %v373
    %484 = vmatprep.subr.mxu0 %v378
    %485 = vmatpush1.msra.mxu0 %v377
    %486 = vmatprep.subr.mxu0 %v382
    %487 = vmatpush1.msra.mxu0 %v381
    %488 = vmatprep.subr.mxu0 %v386
    %489 = vmatpush1.msra.mxu0 %v385
    %490 = vmatprep.subr.mxu0 0.0
    %491 = vmatpush1.msra.mxu0 0.0
    %492 = vmatprep.subr.mxu0 0.0
    %493 = vmatpush1.msra.mxu0 0.0
    %494 = vmatprep.subr.mxu0 0.0
    %495 = vmatpush1.msra.mxu0 0.0
    %496 = vmatprep.subr.mxu0 0.0
    %497 = vmatpush1.msra.mxu0 0.0
    %498 = vmatprep.subr.mxu0 0.0
    %499 = vmatpush1.msra.mxu0 0.0
    %500 = vmatprep.subr.mxu0 0.0
    %501 = vmatpush1.msra.mxu0 0.0
    %502 = vmatprep.subr.mxu0 0.0
    %503 = vmatpush1.msra.mxu0 0.0
    %504 = vmatprep.subr.mxu0 0.0
    %505 = vmatpush1.msra.mxu0 0.0
    %506 = vmatprep.subr.mxu0 0.0
    %507 = vmatpush1.msra.mxu0 0.0
    %508 = vmatprep.subr.mxu0 0.0
    %509 = vmatpush1.msra.mxu0 0.0
    %510 = vmatprep.subr.mxu0 0.0
    %511 = vmatpush1.msra.mxu0 0.0
    %512 = vmatprep.subr.mxu0 0.0
    %513 = vmatpush1.msra.mxu0 0.0
    %514 = vmatprep.subr.mxu0 0.0
    %515 = vmatpush1.msra.mxu0 0.0
    %516 = vmatprep.subr.mxu0 0.0
    %517 = vmatpush1.msra.mxu0 0.0
    %518 = vmatprep.subr.mxu0 0.0
    %519 = vmatpush1.msra.mxu0 0.0
    %520 = vmatprep.subr.mxu0 0.0
    %521 = vmatpush1.msra.mxu0 0.0
    %522 = vmatprep.mubr.f32.mxu0 0.0
    %523 = vmatmul.mubr.f32.gmra.mrb[0].mxu0 %v320
    %v524 = vpop.f32.mrb[0].mxu0
    %v525 = vadd.f32 0.0, %v524
    %v526 = vpop.f32.mrb[0].mxu0
    %v527 = vadd.f32 0.0, %v526
    %528 = vdwg.mxu0
    %v533 = vcombine.low %v454, %v456
    %v534 = vcombine.low %v525, %v527
    %v536 = vunpack.c.l.s4 1966171168
    %v537 = vunpack.c.0.s8 %v536
    %v538 = vlaneseq
    %v539 = vshrl.u32 %v538, 7
    %v540 = vsub.s32 %v537, %v539
    %v541 = vrot.slane %v533, %v540
    %v543 = vunpack.c.l.s4 1966171168
    %v544 = vunpack.c.0.s8 %v543
    %v545 = vlaneseq
    %v546 = vshrl.u32 %v545, 7
    %v547 = vsub.s32 %v544, %v546
    %v548 = vrot.slane %v534, %v547
    %v549 = vcombine.low %v541, %v548
    %v551 = vunpack.c.l.s4 1966171168
    %v552 = vunpack.c.0.s8 %v551
    %v553 = vlaneseq
    %v554 = vshrl.u32 %v553, 7
    %v555 = vsub.s32 %v552, %v554
    %v556 = vrot.slane %v549, %v555
    %v558 = vadd.f32 %v322, %v556
    %v559 = vxor.u32 %v558, 2147483648
    %v560 = vmul.f32 %v559, 1.442695
    %v561 = vpow.pop %v560
    %v562 = vadd.f32 %v561, 1.0
    %v563 = vrcp.pop %v562
    %v564 = vmul.f32 1.0, %v563
    %v566 = vrot.slane %v558, 3
    %v568 = vtanh.pop %v566
    %v570 = vrot.slane %v564, 1
    %v572 = vmul.f32 %v570, %v321
    %v573 = vmul.f32 %v564, %v568
    %v574 = vadd.f32 %v572, %v573
    %v575 = vtanh.pop %v574
    %v576 = vrot.slane %v564, 2
    %v578 = vmul.f32 %v576, %v575
    %s579 = scalar_lea.vmem [#allocation2], 1
    %v580 = vld [vmem:[%s579] ss:$8 sm:$0xf]
    %581 = vmatprep.subr.mxu0 %v324
    %582 = vmatpush1.msra.mxu0 %v323
    %583 = vmatprep.subr.mxu0 %v328
    %584 = vmatpush1.msra.mxu0 %v327
    %585 = vmatprep.subr.mxu0 %v332
    %586 = vmatpush1.msra.mxu0 %v331
    %587 = vmatprep.subr.mxu0 %v336
    %588 = vmatpush1.msra.mxu0 %v335
    %589 = vmatprep.subr.mxu0 %v340
    %590 = vmatpush1.msra.mxu0 %v339
    %591 = vmatprep.subr.mxu0 %v344
    %592 = vmatpush1.msra.mxu0 %v343
    %593 = vmatprep.subr.mxu0 %v348
    %594 = vmatpush1.msra.mxu0 %v347
    %595 = vmatprep.subr.mxu0 %v352
    %596 = vmatpush1.msra.mxu0 %v351
    %597 = vmatprep.subr.mxu0 %v356
    %598 = vmatpush1.msra.mxu0 %v355
    %599 = vmatprep.subr.mxu0 %v360
    %600 = vmatpush1.msra.mxu0 %v359
    %601 = vmatprep.subr.mxu0 %v364
    %602 = vmatpush1.msra.mxu0 %v363
    %603 = vmatprep.subr.mxu0 %v368
    %604 = vmatpush1.msra.mxu0 %v367
    %605 = vmatprep.subr.mxu0 %v372
    %606 = vmatpush1.msra.mxu0 %v371
    %607 = vmatprep.subr.mxu0 %v376
    %608 = vmatpush1.msra.mxu0 %v375
    %609 = vmatprep.subr.mxu0 %v380
    %610 = vmatpush1.msra.mxu0 %v379
    %611 = vmatprep.subr.mxu0 %v384
    %612 = vmatpush1.msra.mxu0 %v383
    %613 = vmatprep.subr.mxu0 0.0
    %614 = vmatpush1.msra.mxu0 0.0
    %615 = vmatprep.subr.mxu0 0.0
    %616 = vmatpush1.msra.mxu0 0.0
    %617 = vmatprep.subr.mxu0 0.0
    %618 = vmatpush1.msra.mxu0 0.0
    %619 = vmatprep.subr.mxu0 0.0
    %620 = vmatpush1.msra.mxu0 0.0
    %621 = vmatprep.subr.mxu0 0.0
    %622 = vmatpush1.msra.mxu0 0.0
    %623 = vmatprep.subr.mxu0 0.0
    %624 = vmatpush1.msra.mxu0 0.0
    %625 = vmatprep.subr.mxu0 0.0
    %626 = vmatpush1.msra.mxu0 0.0
    %627 = vmatprep.subr.mxu0 0.0
    %628 = vmatpush1.msra.mxu0 0.0
    %629 = vmatprep.subr.mxu0 0.0
    %630 = vmatpush1.msra.mxu0 0.0
    %631 = vmatprep.subr.mxu0 0.0
    %632 = vmatpush1.msra.mxu0 0.0
    %633 = vmatprep.subr.mxu0 0.0
    %634 = vmatpush1.msra.mxu0 0.0
    %635 = vmatprep.subr.mxu0 0.0
    %636 = vmatpush1.msra.mxu0 0.0
    %637 = vmatprep.subr.mxu0 0.0
    %638 = vmatpush1.msra.mxu0 0.0
    %639 = vmatprep.subr.mxu0 0.0
    %640 = vmatpush1.msra.mxu0 0.0
    %641 = vmatprep.subr.mxu0 0.0
    %642 = vmatpush1.msra.mxu0 0.0
    %643 = vmatprep.subr.mxu0 0.0
    %644 = vmatpush1.msra.mxu0 0.0
    %645 = vmatprep.mubr.f32.mxu0 0.0
    %646 = vmatmul.mubr.f32.gmra.mrb[0].mxu0 %v578
    %v647 = vpop.f32.mrb[0].mxu0
    %v648 = vadd.f32 0.0, %v647
    %v649 = vpop.f32.mrb[0].mxu0
    %v650 = vadd.f32 0.0, %v649
    %651 = vdwg.mxu0
    %652 = vmatprep.subr.mxu0 %v326
    %653 = vmatpush1.msra.mxu0 %v325
    %654 = vmatprep.subr.mxu0 %v330
    %655 = vmatpush1.msra.mxu0 %v329
    %656 = vmatprep.subr.mxu0 %v334
    %657 = vmatpush1.msra.mxu0 %v333
    %658 = vmatprep.subr.mxu0 %v338
    %659 = vmatpush1.msra.mxu0 %v337
    %660 = vmatprep.subr.mxu0 %v342
    %661 = vmatpush1.msra.mxu0 %v341
    %662 = vmatprep.subr.mxu0 %v346
    %663 = vmatpush1.msra.mxu0 %v345
    %664 = vmatprep.subr.mxu0 %v350
    %665 = vmatpush1.msra.mxu0 %v349
    %666 = vmatprep.subr.mxu0 %v354
    %667 = vmatpush1.msra.mxu0 %v353
    %668 = vmatprep.subr.mxu0 %v358
    %669 = vmatpush1.msra.mxu0 %v357
    %670 = vmatprep.subr.mxu0 %v362
    %671 = vmatpush1.msra.mxu0 %v361
    %672 = vmatprep.subr.mxu0 %v366
    %673 = vmatpush1.msra.mxu0 %v365
    %674 = vmatprep.subr.mxu0 %v370
    %675 = vmatpush1.msra.mxu0 %v369
    %676 = vmatprep.subr.mxu0 %v374
    %677 = vmatpush1.msra.mxu0 %v373
    %678 = vmatprep.subr.mxu0 %v378
    %679 = vmatpush1.msra.mxu0 %v377
    %680 = vmatprep.subr.mxu0 %v382
    %681 = vmatpush1.msra.mxu0 %v381
    %682 = vmatprep.subr.mxu0 %v386
    %683 = vmatpush1.msra.mxu0 %v385
    %684 = vmatprep.subr.mxu0 0.0
    %685 = vmatpush1.msra.mxu0 0.0
    %686 = vmatprep.subr.mxu0 0.0
    %687 = vmatpush1.msra.mxu0 0.0
    %688 = vmatprep.subr.mxu0 0.0
    %689 = vmatpush1.msra.mxu0 0.0
    %690 = vmatprep.subr.mxu0 0.0
    %691 = vmatpush1.msra.mxu0 0.0
    %692 = vmatprep.subr.mxu0 0.0
    %693 = vmatpush1.msra.mxu0 0.0
    %694 = vmatprep.subr.mxu0 0.0
    %695 = vmatpush1.msra.mxu0 0.0
    %696 = vmatprep.subr.mxu0 0.0
    %697 = vmatpush1.msra.mxu0 0.0
    %698 = vmatprep.subr.mxu0 0.0
    %699 = vmatpush1.msra.mxu0 0.0
    %700 = vmatprep.subr.mxu0 0.0
    %701 = vmatpush1.msra.mxu0 0.0
    %702 = vmatprep.subr.mxu0 0.0
    %703 = vmatpush1.msra.mxu0 0.0
    %704 = vmatprep.subr.mxu0 0.0
    %705 = vmatpush1.msra.mxu0 0.0
    %706 = vmatprep.subr.mxu0 0.0
    %707 = vmatpush1.msra.mxu0 0.0
    %708 = vmatprep.subr.mxu0 0.0
    %709 = vmatpush1.msra.mxu0 0.0
    %710 = vmatprep.subr.mxu0 0.0
    %711 = vmatpush1.msra.mxu0 0.0
    %712 = vmatprep.subr.mxu0 0.0
    %713 = vmatpush1.msra.mxu0 0.0
    %714 = vmatprep.subr.mxu0 0.0
    %715 = vmatpush1.msra.mxu0 0.0
    %716 = vmatprep.mubr.f32.mxu0 0.0
    %717 = vmatmul.mubr.f32.gmra.mrb[0].mxu0 %v578
    %v718 = vpop.f32.mrb[0].mxu0
    %v719 = vadd.f32 0.0, %v718
    %v720 = vpop.f32.mrb[0].mxu0
    %v721 = vadd.f32 0.0, %v720
    %722 = vdwg.mxu0
    %v727 = vcombine.low %v648, %v650
    %v728 = vcombine.low %v719, %v721
    %v730 = vunpack.c.l.s4 1966171168
    %v731 = vunpack.c.0.s8 %v730
    %v732 = vlaneseq
    %v733 = vshrl.u32 %v732, 7
    %v734 = vsub.s32 %v731, %v733
    %v735 = vrot.slane %v727, %v734
    %v737 = vunpack.c.l.s4 1966171168
    %v738 = vunpack.c.0.s8 %v737
    %v739 = vlaneseq
    %v740 = vshrl.u32 %v739, 7
    %v741 = vsub.s32 %v738, %v740
    %v742 = vrot.slane %v728, %v741
    %v743 = vcombine.low %v735, %v742
    %v745 = vunpack.c.l.s4 1966171168
    %v746 = vunpack.c.0.s8 %v745
    %v747 = vlaneseq
    %v748 = vshrl.u32 %v747, 7
    %v749 = vsub.s32 %v746, %v748
    %v750 = vrot.slane %v743, %v749
    %v752 = vadd.f32 %v580, %v750
    %v753 = vxor.u32 %v752, 2147483648
    %v754 = vmul.f32 %v753, 1.442695
    %v755 = vpow.pop %v754
    %v756 = vadd.f32 %v755, 1.0
    %v757 = vrcp.pop %v756
    %v758 = vmul.f32 1.0, %v757
    %v760 = vrot.slane %v752, 3
    %v762 = vtanh.pop %v760
    %v764 = vrot.slane %v758, 1
    %v766 = vmul.f32 %v764, %v574
    %v767 = vmul.f32 %v758, %v762
    %v768 = vadd.f32 %v766, %v767
    %v769 = vtanh.pop %v768
    %v770 = vrot.slane %v758, 2
    %v772 = vmul.f32 %v770, %v769
    %s773 = scalar_lea.vmem [#allocation2], 2
    %v774 = vld [vmem:[%s773] ss:$8 sm:$0xf]
    %775 = vmatprep.subr.mxu0 %v324
    %776 = vmatpush1.msra.mxu0 %v323
    %777 = vmatprep.subr.mxu0 %v328
    %778 = vmatpush1.msra.mxu0 %v327
    %779 = vmatprep.subr.mxu0 %v332
    %780 = vmatpush1.msra.mxu0 %v331
    %781 = vmatprep.subr.mxu0 %v336
    %782 = vmatpush1.msra.mxu0 %v335
    %783 = vmatprep.subr.mxu0 %v340
    %784 = vmatpush1.msra.mxu0 %v339
    %785 = vmatprep.subr.mxu0 %v344
    %786 = vmatpush1.msra.mxu0 %v343
    %787 = vmatprep.subr.mxu0 %v348
    %788 = vmatpush1.msra.mxu0 %v347
    %789 = vmatprep.subr.mxu0 %v352
    %790 = vmatpush1.msra.mxu0 %v351
    %791 = vmatprep.subr.mxu0 %v356
    %792 = vmatpush1.msra.mxu0 %v355
    %793 = vmatprep.subr.mxu0 %v360
    %794 = vmatpush1.msra.mxu0 %v359
    %795 = vmatprep.subr.mxu0 %v364
    %796 = vmatpush1.msra.mxu0 %v363
    %797 = vmatprep.subr.mxu0 %v368
    %798 = vmatpush1.msra.mxu0 %v367
    %799 = vmatprep.subr.mxu0 %v372
    %800 = vmatpush1.msra.mxu0 %v371
    %801 = vmatprep.subr.mxu0 %v376
    %802 = vmatpush1.msra.mxu0 %v375
    %803 = vmatprep.subr.mxu0 %v380
    %804 = vmatpush1.msra.mxu0 %v379
    %805 = vmatprep.subr.mxu0 %v384
    %806 = vmatpush1.msra.mxu0 %v383
    %807 = vmatprep.subr.mxu0 0.0
    %808 = vmatpush1.msra.mxu0 0.0
    %809 = vmatprep.subr.mxu0 0.0
    %810 = vmatpush1.msra.mxu0 0.0
    %811 = vmatprep.subr.mxu0 0.0
    %812 = vmatpush1.msra.mxu0 0.0
    %813 = vmatprep.subr.mxu0 0.0
    %814 = vmatpush1.msra.mxu0 0.0
    %815 = vmatprep.subr.mxu0 0.0
    %816 = vmatpush1.msra.mxu0 0.0
    %817 = vmatprep.subr.mxu0 0.0
    %818 = vmatpush1.msra.mxu0 0.0
    %819 = vmatprep.subr.mxu0 0.0
    %820 = vmatpush1.msra.mxu0 0.0
    %821 = vmatprep.subr.mxu0 0.0
    %822 = vmatpush1.msra.mxu0 0.0
    %823 = vmatprep.subr.mxu0 0.0
    %824 = vmatpush1.msra.mxu0 0.0
    %825 = vmatprep.subr.mxu0 0.0
    %826 = vmatpush1.msra.mxu0 0.0
    %827 = vmatprep.subr.mxu0 0.0
    %828 = vmatpush1.msra.mxu0 0.0
    %829 = vmatprep.subr.mxu0 0.0
    %830 = vmatpush1.msra.mxu0 0.0
    %831 = vmatprep.subr.mxu0 0.0
    %832 = vmatpush1.msra.mxu0 0.0
    %833 = vmatprep.subr.mxu0 0.0
    %834 = vmatpush1.msra.mxu0 0.0
    %835 = vmatprep.subr.mxu0 0.0
    %836 = vmatpush1.msra.mxu0 0.0
    %837 = vmatprep.subr.mxu0 0.0
    %838 = vmatpush1.msra.mxu0 0.0
    %839 = vmatprep.mubr.f32.mxu0 0.0
    %840 = vmatmul.mubr.f32.gmra.mrb[0].mxu0 %v772
    %v841 = vpop.f32.mrb[0].mxu0
    %v842 = vadd.f32 0.0, %v841
    %v843 = vpop.f32.mrb[0].mxu0
    %v844 = vadd.f32 0.0, %v843
    %845 = vdwg.mxu0
    %846 = vmatprep.subr.mxu0 %v326
    %847 = vmatpush1.msra.mxu0 %v325
    %848 = vmatprep.subr.mxu0 %v330
    %849 = vmatpush1.msra.mxu0 %v329
    %850 = vmatprep.subr.mxu0 %v334
    %851 = vmatpush1.msra.mxu0 %v333
    %852 = vmatprep.subr.mxu0 %v338
    %853 = vmatpush1.msra.mxu0 %v337
    %854 = vmatprep.subr.mxu0 %v342
    %855 = vmatpush1.msra.mxu0 %v341
    %856 = vmatprep.subr.mxu0 %v346
    %857 = vmatpush1.msra.mxu0 %v345
    %858 = vmatprep.subr.mxu0 %v350
    %859 = vmatpush1.msra.mxu0 %v349
    %860 = vmatprep.subr.mxu0 %v354
    %861 = vmatpush1.msra.mxu0 %v353
    %862 = vmatprep.subr.mxu0 %v358
    %863 = vmatpush1.msra.mxu0 %v357
    %864 = vmatprep.subr.mxu0 %v362
    %865 = vmatpush1.msra.mxu0 %v361
    %866 = vmatprep.subr.mxu0 %v366
    %867 = vmatpush1.msra.mxu0 %v365
    %868 = vmatprep.subr.mxu0 %v370
    %869 = vmatpush1.msra.mxu0 %v369
    %870 = vmatprep.subr.mxu0 %v374
    %871 = vmatpush1.msra.mxu0 %v373
    %872 = vmatprep.subr.mxu0 %v378
    %873 = vmatpush1.msra.mxu0 %v377
    %874 = vmatprep.subr.mxu0 %v382
    %875 = vmatpush1.msra.mxu0 %v381
    %876 = vmatprep.subr.mxu0 %v386
    %877 = vmatpush1.msra.mxu0 %v385
    %878 = vmatprep.subr.mxu0 0.0
    %879 = vmatpush1.msra.mxu0 0.0
    %880 = vmatprep.subr.mxu0 0.0
    %881 = vmatpush1.msra.mxu0 0.0
    %882 = vmatprep.subr.mxu0 0.0
    %883 = vmatpush1.msra.mxu0 0.0
    %884 = vmatprep.subr.mxu0 0.0
    %885 = vmatpush1.msra.mxu0 0.0
    %886 = vmatprep.subr.mxu0 0.0
    %887 = vmatpush1.msra.mxu0 0.0
    %888 = vmatprep.subr.mxu0 0.0
    %889 = vmatpush1.msra.mxu0 0.0
    %890 = vmatprep.subr.mxu0 0.0
    %891 = vmatpush1.msra.mxu0 0.0
    %892 = vmatprep.subr.mxu0 0.0
    %893 = vmatpush1.msra.mxu0 0.0
    %894 = vmatprep.subr.mxu0 0.0
    %895 = vmatpush1.msra.mxu0 0.0
    %896 = vmatprep.subr.mxu0 0.0
    %897 = vmatpush1.msra.mxu0 0.0
    %898 = vmatprep.subr.mxu0 0.0
    %899 = vmatpush1.msra.mxu0 0.0
    %900 = vmatprep.subr.mxu0 0.0
    %901 = vmatpush1.msra.mxu0 0.0
    %902 = vmatprep.subr.mxu0 0.0
    %903 = vmatpush1.msra.mxu0 0.0
    %904 = vmatprep.subr.mxu0 0.0
    %905 = vmatpush1.msra.mxu0 0.0
    %906 = vmatprep.subr.mxu0 0.0
    %907 = vmatpush1.msra.mxu0 0.0
    %908 = vmatprep.subr.mxu0 0.0
    %909 = vmatpush1.msra.mxu0 0.0
    %910 = vmatprep.mubr.f32.mxu0 0.0
    %911 = vmatmul.mubr.f32.gmra.mrb[0].mxu0 %v772
    %v912 = vpop.f32.mrb[0].mxu0
    %v913 = vadd.f32 0.0, %v912
    %v914 = vpop.f32.mrb[0].mxu0
    %v915 = vadd.f32 0.0, %v914
    %916 = vdwg.mxu0
    %v921 = vcombine.low %v842, %v844
    %v922 = vcombine.low %v913, %v915
    %v924 = vunpack.c.l.s4 1966171168
    %v925 = vunpack.c.0.s8 %v924
    %v926 = vlaneseq
    %v927 = vshrl.u32 %v926, 7
    %v928 = vsub.s32 %v925, %v927
    %v929 = vrot.slane %v921, %v928
    %v931 = vunpack.c.l.s4 1966171168
    %v932 = vunpack.c.0.s8 %v931
    %v933 = vlaneseq
    %v934 = vshrl.u32 %v933, 7
    %v935 = vsub.s32 %v932, %v934
    %v936 = vrot.slane %v922, %v935
    %v937 = vcombine.low %v929, %v936
    %v939 = vunpack.c.l.s4 1966171168
    %v940 = vunpack.c.0.s8 %v939
    %v941 = vlaneseq
    %v942 = vshrl.u32 %v941, 7
    %v943 = vsub.s32 %v940, %v942
    %v944 = vrot.slane %v937, %v943
    %v946 = vadd.f32 %v774, %v944
    %v947 = vxor.u32 %v946, 2147483648
    %v948 = vmul.f32 %v947, 1.442695
    %v949 = vpow.pop %v948
    %v950 = vadd.f32 %v949, 1.0
    %v951 = vrcp.pop %v950
    %v952 = vmul.f32 1.0, %v951
    %v954 = vrot.slane %v946, 3
    %v956 = vtanh.pop %v954
    %v958 = vrot.slane %v952, 1
    %v960 = vmul.f32 %v958, %v768
    %v961 = vmul.f32 %v952, %v956
    %v962 = vadd.f32 %v960, %v961
    %v963 = vtanh.pop %v962
    %v964 = vrot.slane %v952, 2
    %v966 = vmul.f32 %v964, %v963
    %s967 = scalar_lea.vmem [#allocation2], 3
    %v968 = vld [vmem:[%s967] ss:$8 sm:$0xf]
    %969 = vmatprep.subr.mxu0 %v324
    %970 = vmatpush1.msra.mxu0 %v323
    %971 = vmatprep.subr.mxu0 %v328
    %972 = vmatpush1.msra.mxu0 %v327
    %973 = vmatprep.subr.mxu0 %v332
    %974 = vmatpush1.msra.mxu0 %v331
    %975 = vmatprep.subr.mxu0 %v336
    %976 = vmatpush1.msra.mxu0 %v335
    %977 = vmatprep.subr.mxu0 %v340
    %978 = vmatpush1.msra.mxu0 %v339
    %979 = vmatprep.subr.mxu0 %v344
    %980 = vmatpush1.msra.mxu0 %v343
    %981 = vmatprep.subr.mxu0 %v348
    %982 = vmatpush1.msra.mxu0 %v347
    %983 = vmatprep.subr.mxu0 %v352
    %984 = vmatpush1.msra.mxu0 %v351
    %985 = vmatprep.subr.mxu0 %v356
    %986 = vmatpush1.msra.mxu0 %v355
    %987 = vmatprep.subr.mxu0 %v360
    %988 = vmatpush1.msra.mxu0 %v359
    %989 = vmatprep.subr.mxu0 %v364
    %990 = vmatpush1.msra.mxu0 %v363
    %991 = vmatprep.subr.mxu0 %v368
    %992 = vmatpush1.msra.mxu0 %v367
    %993 = vmatprep.subr.mxu0 %v372
    %994 = vmatpush1.msra.mxu0 %v371
    %995 = vmatprep.subr.mxu0 %v376
    %996 = vmatpush1.msra.mxu0 %v375
    %997 = vmatprep.subr.mxu0 %v380
    %998 = vmatpush1.msra.mxu0 %v379
    %999 = vmatprep.subr.mxu0 %v384
    %1000 = vmatpush1.msra.mxu0 %v383
    %1001 = vmatprep.subr.mxu0 0.0
    %1002 = vmatpush1.msra.mxu0 0.0
    %1003 = vmatprep.subr.mxu0 0.0
    %1004 = vmatpush1.msra.mxu0 0.0
    %1005 = vmatprep.subr.mxu0 0.0
    %1006 = vmatpush1.msra.mxu0 0.0
    %1007 = vmatprep.subr.mxu0 0.0
    %1008 = vmatpush1.msra.mxu0 0.0
    %1009 = vmatprep.subr.mxu0 0.0
    %1010 = vmatpush1.msra.mxu0 0.0
    %1011 = vmatprep.subr.mxu0 0.0
    %1012 = vmatpush1.msra.mxu0 0.0
    %1013 = vmatprep.subr.mxu0 0.0
    %1014 = vmatpush1.msra.mxu0 0.0
    %1015 = vmatprep.subr.mxu0 0.0
    %1016 = vmatpush1.msra.mxu0 0.0
    %1017 = vmatprep.subr.mxu0 0.0
    %1018 = vmatpush1.msra.mxu0 0.0
    %1019 = vmatprep.subr.mxu0 0.0
    %1020 = vmatpush1.msra.mxu0 0.0
    %1021 = vmatprep.subr.mxu0 0.0
    %1022 = vmatpush1.msra.mxu0 0.0
    %1023 = vmatprep.subr.mxu0 0.0
    %1024 = vmatpush1.msra.mxu0 0.0
    %1025 = vmatprep.subr.mxu0 0.0
    %1026 = vmatpush1.msra.mxu0 0.0
    %1027 = vmatprep.subr.mxu0 0.0
    %1028 = vmatpush1.msra.mxu0 0.0
    %1029 = vmatprep.subr.mxu0 0.0
    %1030 = vmatpush1.msra.mxu0 0.0
    %1031 = vmatprep.subr.mxu0 0.0
    %1032 = vmatpush1.msra.mxu0 0.0
    %1033 = vmatprep.mubr.f32.mxu0 0.0
    %1034 = vmatmul.mubr.f32.gmra.mrb[0].mxu0 %v966
    %v1035 = vpop.f32.mrb[0].mxu0
    %v1036 = vadd.f32 0.0, %v1035
    %v1037 = vpop.f32.mrb[0].mxu0
    %v1038 = vadd.f32 0.0, %v1037
    %1039 = vdwg.mxu0
    %1040 = vmatprep.subr.mxu0 %v326
    %1041 = vmatpush1.msra.mxu0 %v325
    %1042 = vmatprep.subr.mxu0 %v330
    %1043 = vmatpush1.msra.mxu0 %v329
    %1044 = vmatprep.subr.mxu0 %v334
    %1045 = vmatpush1.msra.mxu0 %v333
    %1046 = vmatprep.subr.mxu0 %v338
    %1047 = vmatpush1.msra.mxu0 %v337
    %1048 = vmatprep.subr.mxu0 %v342
    %1049 = vmatpush1.msra.mxu0 %v341
    %1050 = vmatprep.subr.mxu0 %v346
    %1051 = vmatpush1.msra.mxu0 %v345
    %1052 = vmatprep.subr.mxu0 %v350
    %1053 = vmatpush1.msra.mxu0 %v349
    %1054 = vmatprep.subr.mxu0 %v354
    %1055 = vmatpush1.msra.mxu0 %v353
    %1056 = vmatprep.subr.mxu0 %v358
    %1057 = vmatpush1.msra.mxu0 %v357
    %1058 = vmatprep.subr.mxu0 %v362
    %1059 = vmatpush1.msra.mxu0 %v361
    %1060 = vmatprep.subr.mxu0 %v366
    %1061 = vmatpush1.msra.mxu0 %v365
    %1062 = vmatprep.subr.mxu0 %v370
    %1063 = vmatpush1.msra.mxu0 %v369
    %1064 = vmatprep.subr.mxu0 %v374
    %1065 = vmatpush1.msra.mxu0 %v373
    %1066 = vmatprep.subr.mxu0 %v378
    %1067 = vmatpush1.msra.mxu0 %v377
    %1068 = vmatprep.subr.mxu0 %v382
    %1069 = vmatpush1.msra.mxu0 %v381
    %1070 = vmatprep.subr.mxu0 %v386
    %1071 = vmatpush1.msra.mxu0 %v385
    %1072 = vmatprep.subr.mxu0 0.0
    %1073 = vmatpush1.msra.mxu0 0.0
    %1074 = vmatprep.subr.mxu0 0.0
    %1075 = vmatpush1.msra.mxu0 0.0
    %1076 = vmatprep.subr.mxu0 0.0
    %1077 = vmatpush1.msra.mxu0 0.0
    %1078 = vmatprep.subr.mxu0 0.0
    %1079 = vmatpush1.msra.mxu0 0.0
    %1080 = vmatprep.subr.mxu0 0.0
    %1081 = vmatpush1.msra.mxu0 0.0
    %1082 = vmatprep.subr.mxu0 0.0
    %1083 = vmatpush1.msra.mxu0 0.0
    %1084 = vmatprep.subr.mxu0 0.0
    %1085 = vmatpush1.msra.mxu0 0.0
    %1086 = vmatprep.subr.mxu0 0.0
    %1087 = vmatpush1.msra.mxu0 0.0
    %1088 = vmatprep.subr.mxu0 0.0
    %1089 = vmatpush1.msra.mxu0 0.0
    %1090 = vmatprep.subr.mxu0 0.0
    %1091 = vmatpush1.msra.mxu0 0.0
    %1092 = vmatprep.subr.mxu0 0.0
    %1093 = vmatpush1.msra.mxu0 0.0
    %1094 = vmatprep.subr.mxu0 0.0
    %1095 = vmatpush1.msra.mxu0 0.0
    %1096 = vmatprep.subr.mxu0 0.0
    %1097 = vmatpush1.msra.mxu0 0.0
    %1098 = vmatprep.subr.mxu0 0.0
    %1099 = vmatpush1.msra.mxu0 0.0
    %1100 = vmatprep.subr.mxu0 0.0
    %1101 = vmatpush1.msra.mxu0 0.0
    %1102 = vmatprep.subr.mxu0 0.0
    %1103 = vmatpush1.msra.mxu0 0.0
    %1104 = vmatprep.mubr.f32.mxu0 0.0
    %1105 = vmatmul.mubr.f32.gmra.mrb[0].mxu0 %v966
    %v1106 = vpop.f32.mrb[0].mxu0
    %v1107 = vadd.f32 0.0, %v1106
    %v1108 = vpop.f32.mrb[0].mxu0
    %v1109 = vadd.f32 0.0, %v1108
    %1110 = vdwg.mxu0
    %v1115 = vcombine.low %v1036, %v1038
    %v1116 = vcombine.low %v1107, %v1109
    %v1118 = vunpack.c.l.s4 1966171168
    %v1119 = vunpack.c.0.s8 %v1118
    %v1120 = vlaneseq
    %v1121 = vshrl.u32 %v1120, 7
    %v1122 = vsub.s32 %v1119, %v1121
    %v1123 = vrot.slane %v1115, %v1122
    %v1125 = vunpack.c.l.s4 1966171168
    %v1126 = vunpack.c.0.s8 %v1125
    %v1127 = vlaneseq
    %v1128 = vshrl.u32 %v1127, 7
    %v1129 = vsub.s32 %v1126, %v1128
    %v1130 = vrot.slane %v1116, %v1129
    %v1131 = vcombine.low %v1123, %v1130
    %v1133 = vunpack.c.l.s4 1966171168
    %v1134 = vunpack.c.0.s8 %v1133
    %v1135 = vlaneseq
    %v1136 = vshrl.u32 %v1135, 7
    %v1137 = vsub.s32 %v1134, %v1136
    %v1138 = vrot.slane %v1131, %v1137
    %v1140 = vadd.f32 %v968, %v1138
    %v1141 = vxor.u32 %v1140, 2147483648
    %v1142 = vmul.f32 %v1141, 1.442695
    %v1143 = vpow.pop %v1142
    %v1144 = vadd.f32 %v1143, 1.0
    %v1145 = vrcp.pop %v1144
    %v1146 = vmul.f32 1.0, %v1145
    %v1148 = vrot.slane %v1140, 3
    %v1150 = vtanh.pop %v1148
    %v1152 = vrot.slane %v1146, 1
    %v1154 = vmul.f32 %v1152, %v962
    %v1155 = vmul.f32 %v1146, %v1150
    %v1156 = vadd.f32 %v1154, %v1155
    %v1157 = vtanh.pop %v1156
    %v1158 = vrot.slane %v1146, 2
    %v1160 = vmul.f32 %v1158, %v1157
    %s1161 = scalar_lea.vmem [#allocation2], 4
    %v1162 = vld [vmem:[%s1161] ss:$8 sm:$0xf]
    %1163 = vmatprep.subr.mxu0 %v324
    %1164 = vmatpush1.msra.mxu0 %v323
    %1165 = vmatprep.subr.mxu0 %v328
    %1166 = vmatpush1.msra.mxu0 %v327
    %1167 = vmatprep.subr.mxu0 %v332
    %1168 = vmatpush1.msra.mxu0 %v331
    %1169 = vmatprep.subr.mxu0 %v336
    %1170 = vmatpush1.msra.mxu0 %v335
    %1171 = vmatprep.subr.mxu0 %v340
    %1172 = vmatpush1.msra.mxu0 %v339
    %1173 = vmatprep.subr.mxu0 %v344
    %1174 = vmatpush1.msra.mxu0 %v343
    %1175 = vmatprep.subr.mxu0 %v348
    %1176 = vmatpush1.msra.mxu0 %v347
    %1177 = vmatprep.subr.mxu0 %v352
    %1178 = vmatpush1.msra.mxu0 %v351
    %1179 = vmatprep.subr.mxu0 %v356
    %1180 = vmatpush1.msra.mxu0 %v355
    %1181 = vmatprep.subr.mxu0 %v360
    %1182 = vmatpush1.msra.mxu0 %v359
    %1183 = vmatprep.subr.mxu0 %v364
    %1184 = vmatpush1.msra.mxu0 %v363
    %1185 = vmatprep.subr.mxu0 %v368
    %1186 = vmatpush1.msra.mxu0 %v367
    %1187 = vmatprep.subr.mxu0 %v372
    %1188 = vmatpush1.msra.mxu0 %v371
    %1189 = vmatprep.subr.mxu0 %v376
    %1190 = vmatpush1.msra.mxu0 %v375
    %1191 = vmatprep.subr.mxu0 %v380
    %1192 = vmatpush1.msra.mxu0 %v379
    %1193 = vmatprep.subr.mxu0 %v384
    %1194 = vmatpush1.msra.mxu0 %v383
    %1195 = vmatprep.subr.mxu0 0.0
    %1196 = vmatpush1.msra.mxu0 0.0
    %1197 = vmatprep.subr.mxu0 0.0
    %1198 = vmatpush1.msra.mxu0 0.0
    %1199 = vmatprep.subr.mxu0 0.0
    %1200 = vmatpush1.msra.mxu0 0.0
    %1201 = vmatprep.subr.mxu0 0.0
    %1202 = vmatpush1.msra.mxu0 0.0
    %1203 = vmatprep.subr.mxu0 0.0
    %1204 = vmatpush1.msra.mxu0 0.0
    %1205 = vmatprep.subr.mxu0 0.0
    %1206 = vmatpush1.msra.mxu0 0.0
    %1207 = vmatprep.subr.mxu0 0.0
    %1208 = vmatpush1.msra.mxu0 0.0
    %1209 = vmatprep.subr.mxu0 0.0
    %1210 = vmatpush1.msra.mxu0 0.0
    %1211 = vmatprep.subr.mxu0 0.0
    %1212 = vmatpush1.msra.mxu0 0.0
    %1213 = vmatprep.subr.mxu0 0.0
    %1214 = vmatpush1.msra.mxu0 0.0
    %1215 = vmatprep.subr.mxu0 0.0
    %1216 = vmatpush1.msra.mxu0 0.0
    %1217 = vmatprep.subr.mxu0 0.0
    %1218 = vmatpush1.msra.mxu0 0.0
    %1219 = vmatprep.subr.mxu0 0.0
    %1220 = vmatpush1.msra.mxu0 0.0
    %1221 = vmatprep.subr.mxu0 0.0
    %1222 = vmatpush1.msra.mxu0 0.0
    %1223 = vmatprep.subr.mxu0 0.0
    %1224 = vmatpush1.msra.mxu0 0.0
    %1225 = vmatprep.subr.mxu0 0.0
    %1226 = vmatpush1.msra.mxu0 0.0
    %1227 = vmatprep.mubr.f32.mxu0 0.0
    %1228 = vmatmul.mubr.f32.gmra.mrb[0].mxu0 %v1160
    %v1229 = vpop.f32.mrb[0].mxu0
    %v1230 = vadd.f32 0.0, %v1229
    %v1231 = vpop.f32.mrb[0].mxu0
    %v1232 = vadd.f32 0.0, %v1231
    %1233 = vdwg.mxu0
    %1234 = vmatprep.subr.mxu0 %v326
    %1235 = vmatpush1.msra.mxu0 %v325
    %1236 = vmatprep.subr.mxu0 %v330
    %1237 = vmatpush1.msra.mxu0 %v329
    %1238 = vmatprep.subr.mxu0 %v334
    %1239 = vmatpush1.msra.mxu0 %v333
    %1240 = vmatprep.subr.mxu0 %v338
    %1241 = vmatpush1.msra.mxu0 %v337
    %1242 = vmatprep.subr.mxu0 %v342
    %1243 = vmatpush1.msra.mxu0 %v341
    %1244 = vmatprep.subr.mxu0 %v346
    %1245 = vmatpush1.msra.mxu0 %v345
    %1246 = vmatprep.subr.mxu0 %v350
    %1247 = vmatpush1.msra.mxu0 %v349
    %1248 = vmatprep.subr.mxu0 %v354
    %1249 = vmatpush1.msra.mxu0 %v353
    %1250 = vmatprep.subr.mxu0 %v358
    %1251 = vmatpush1.msra.mxu0 %v357
    %1252 = vmatprep.subr.mxu0 %v362
    %1253 = vmatpush1.msra.mxu0 %v361
    %1254 = vmatprep.subr.mxu0 %v366
    %1255 = vmatpush1.msra.mxu0 %v365
    %1256 = vmatprep.subr.mxu0 %v370
    %1257 = vmatpush1.msra.mxu0 %v369
    %1258 = vmatprep.subr.mxu0 %v374
    %1259 = vmatpush1.msra.mxu0 %v373
    %1260 = vmatprep.subr.mxu0 %v378
    %1261 = vmatpush1.msra.mxu0 %v377
    %1262 = vmatprep.subr.mxu0 %v382
    %1263 = vmatpush1.msra.mxu0 %v381
    %1264 = vmatprep.subr.mxu0 %v386
    %1265 = vmatpush1.msra.mxu0 %v385
    %1266 = vmatprep.subr.mxu0 0.0
    %1267 = vmatpush1.msra.mxu0 0.0
    %1268 = vmatprep.subr.mxu0 0.0
    %1269 = vmatpush1.msra.mxu0 0.0
    %1270 = vmatprep.subr.mxu0 0.0
    %1271 = vmatpush1.msra.mxu0 0.0
    %1272 = vmatprep.subr.mxu0 0.0
    %1273 = vmatpush1.msra.mxu0 0.0
    %1274 = vmatprep.subr.mxu0 0.0
    %1275 = vmatpush1.msra.mxu0 0.0
    %1276 = vmatprep.subr.mxu0 0.0
    %1277 = vmatpush1.msra.mxu0 0.0
    %1278 = vmatprep.subr.mxu0 0.0
    %1279 = vmatpush1.msra.mxu0 0.0
    %1280 = vmatprep.subr.mxu0 0.0
    %1281 = vmatpush1.msra.mxu0 0.0
    %1282 = vmatprep.subr.mxu0 0.0
    %1283 = vmatpush1.msra.mxu0 0.0
    %1284 = vmatprep.subr.mxu0 0.0
    %1285 = vmatpush1.msra.mxu0 0.0
    %1286 = vmatprep.subr.mxu0 0.0
    %1287 = vmatpush1.msra.mxu0 0.0
    %1288 = vmatprep.subr.mxu0 0.0
    %1289 = vmatpush1.msra.mxu0 0.0
    %1290 = vmatprep.subr.mxu0 0.0
    %1291 = vmatpush1.msra.mxu0 0.0
    %1292 = vmatprep.subr.mxu0 0.0
    %1293 = vmatpush1.msra.mxu0 0.0
    %1294 = vmatprep.subr.mxu0 0.0
    %1295 = vmatpush1.msra.mxu0 0.0
    %1296 = vmatprep.subr.mxu0 0.0
    %1297 = vmatpush1.msra.mxu0 0.0
    %1298 = vmatprep.mubr.f32.mxu0 0.0
    %1299 = vmatmul.mubr.f32.gmra.mrb[0].mxu0 %v1160
    %v1300 = vpop.f32.mrb[0].mxu0
    %v1301 = vadd.f32 0.0, %v1300
    %v1302 = vpop.f32.mrb[0].mxu0
    %v1303 = vadd.f32 0.0, %v1302
    %1304 = vdwg.mxu0
    %v1309 = vcombine.low %v1230, %v1232
    %v1310 = vcombine.low %v1301, %v1303
    %v1312 = vunpack.c.l.s4 1966171168
    %v1313 = vunpack.c.0.s8 %v1312
    %v1314 = vlaneseq
    %v1315 = vshrl.u32 %v1314, 7
    %v1316 = vsub.s32 %v1313, %v1315
    %v1317 = vrot.slane %v1309, %v1316
    %v1319 = vunpack.c.l.s4 1966171168
    %v1320 = vunpack.c.0.s8 %v1319
    %v1321 = vlaneseq
    %v1322 = vshrl.u32 %v1321, 7
    %v1323 = vsub.s32 %v1320, %v1322
    %v1324 = vrot.slane %v1310, %v1323
    %v1325 = vcombine.low %v1317, %v1324
    %v1327 = vunpack.c.l.s4 1966171168
    %v1328 = vunpack.c.0.s8 %v1327
    %v1329 = vlaneseq
    %v1330 = vshrl.u32 %v1329, 7
    %v1331 = vsub.s32 %v1328, %v1330
    %v1332 = vrot.slane %v1325, %v1331
    %v1334 = vadd.f32 %v1162, %v1332
    %v1335 = vxor.u32 %v1334, 2147483648
    %v1336 = vmul.f32 %v1335, 1.442695
    %v1337 = vpow.pop %v1336
    %v1338 = vadd.f32 %v1337, 1.0
    %v1339 = vrcp.pop %v1338
    %v1340 = vmul.f32 1.0, %v1339
    %v1342 = vrot.slane %v1334, 3
    %v1344 = vtanh.pop %v1342
    %v1346 = vrot.slane %v1340, 1
    %v1348 = vmul.f32 %v1346, %v1156
    %v1349 = vmul.f32 %v1340, %v1344
    %v1350 = vadd.f32 %v1348, %v1349
    %v1351 = vtanh.pop %v1350
    %v1352 = vrot.slane %v1340, 2
    %v1354 = vmul.f32 %v1352, %v1351
    %s1355 = scalar_lea.vmem [#allocation2], 5
    %v1356 = vld [vmem:[%s1355] ss:$8 sm:$0xf]
    %1357 = vmatprep.subr.mxu0 %v324
    %1358 = vmatpush1.msra.mxu0 %v323
    %1359 = vmatprep.subr.mxu0 %v328
    %1360 = vmatpush1.msra.mxu0 %v327
    %1361 = vmatprep.subr.mxu0 %v332
    %1362 = vmatpush1.msra.mxu0 %v331
    %1363 = vmatprep.subr.mxu0 %v336
    %1364 = vmatpush1.msra.mxu0 %v335
    %1365 = vmatprep.subr.mxu0 %v340
    %1366 = vmatpush1.msra.mxu0 %v339
    %1367 = vmatprep.subr.mxu0 %v344
    %1368 = vmatpush1.msra.mxu0 %v343
    %1369 = vmatprep.subr.mxu0 %v348
    %1370 = vmatpush1.msra.mxu0 %v347
    %1371 = vmatprep.subr.mxu0 %v352
    %1372 = vmatpush1.msra.mxu0 %v351
    %1373 = vmatprep.subr.mxu0 %v356
    %1374 = vmatpush1.msra.mxu0 %v355
    %1375 = vmatprep.subr.mxu0 %v360
    %1376 = vmatpush1.msra.mxu0 %v359
    %1377 = vmatprep.subr.mxu0 %v364
    %1378 = vmatpush1.msra.mxu0 %v363
    %1379 = vmatprep.subr.mxu0 %v368
    %1380 = vmatpush1.msra.mxu0 %v367
    %1381 = vmatprep.subr.mxu0 %v372
    %1382 = vmatpush1.msra.mxu0 %v371
    %1383 = vmatprep.subr.mxu0 %v376
    %1384 = vmatpush1.msra.mxu0 %v375
    %1385 = vmatprep.subr.mxu0 %v380
    %1386 = vmatpush1.msra.mxu0 %v379
    %1387 = vmatprep.subr.mxu0 %v384
    %1388 = vmatpush1.msra.mxu0 %v383
    %1389 = vmatprep.subr.mxu0 0.0
    %1390 = vmatpush1.msra.mxu0 0.0
    %1391 = vmatprep.subr.mxu0 0.0
    %1392 = vmatpush1.msra.mxu0 0.0
    %1393 = vmatprep.subr.mxu0 0.0
    %1394 = vmatpush1.msra.mxu0 0.0
    %1395 = vmatprep.subr.mxu0 0.0
    %1396 = vmatpush1.msra.mxu0 0.0
    %1397 = vmatprep.subr.mxu0 0.0
    %1398 = vmatpush1.msra.mxu0 0.0
    %1399 = vmatprep.subr.mxu0 0.0
    %1400 = vmatpush1.msra.mxu0 0.0
    %1401 = vmatprep.subr.mxu0 0.0
    %1402 = vmatpush1.msra.mxu0 0.0
    %1403 = vmatprep.subr.mxu0 0.0
    %1404 = vmatpush1.msra.mxu0 0.0
    %1405 = vmatprep.subr.mxu0 0.0
    %1406 = vmatpush1.msra.mxu0 0.0
    %1407 = vmatprep.subr.mxu0 0.0
    %1408 = vmatpush1.msra.mxu0 0.0
    %1409 = vmatprep.subr.mxu0 0.0
    %1410 = vmatpush1.msra.mxu0 0.0
    %1411 = vmatprep.subr.mxu0 0.0
    %1412 = vmatpush1.msra.mxu0 0.0
    %1413 = vmatprep.subr.mxu0 0.0
    %1414 = vmatpush1.msra.mxu0 0.0
    %1415 = vmatprep.subr.mxu0 0.0
    %1416 = vmatpush1.msra.mxu0 0.0
    %1417 = vmatprep.subr.mxu0 0.0
    %1418 = vmatpush1.msra.mxu0 0.0
    %1419 = vmatprep.subr.mxu0 0.0
    %1420 = vmatpush1.msra.mxu0 0.0
    %1421 = vmatprep.mubr.f32.mxu0 0.0
    %1422 = vmatmul.mubr.f32.gmra.mrb[0].mxu0 %v1354
    %v1423 = vpop.f32.mrb[0].mxu0
    %v1424 = vadd.f32 0.0, %v1423
    %v1425 = vpop.f32.mrb[0].mxu0
    %v1426 = vadd.f32 0.0, %v1425
    %1427 = vdwg.mxu0
    %1428 = vmatprep.subr.mxu0 %v326
    %1429 = vmatpush1.msra.mxu0 %v325
    %1430 = vmatprep.subr.mxu0 %v330
    %1431 = vmatpush1.msra.mxu0 %v329
    %1432 = vmatprep.subr.mxu0 %v334
    %1433 = vmatpush1.msra.mxu0 %v333
    %1434 = vmatprep.subr.mxu0 %v338
    %1435 = vmatpush1.msra.mxu0 %v337
    %1436 = vmatprep.subr.mxu0 %v342
    %1437 = vmatpush1.msra.mxu0 %v341
    %1438 = vmatprep.subr.mxu0 %v346
    %1439 = vmatpush1.msra.mxu0 %v345
    %1440 = vmatprep.subr.mxu0 %v350
    %1441 = vmatpush1.msra.mxu0 %v349
    %1442 = vmatprep.subr.mxu0 %v354
    %1443 = vmatpush1.msra.mxu0 %v353
    %1444 = vmatprep.subr.mxu0 %v358
    %1445 = vmatpush1.msra.mxu0 %v357
    %1446 = vmatprep.subr.mxu0 %v362
    %1447 = vmatpush1.msra.mxu0 %v361
    %1448 = vmatprep.subr.mxu0 %v366
    %1449 = vmatpush1.msra.mxu0 %v365
    %1450 = vmatprep.subr.mxu0 %v370
    %1451 = vmatpush1.msra.mxu0 %v369
    %1452 = vmatprep.subr.mxu0 %v374
    %1453 = vmatpush1.msra.mxu0 %v373
    %1454 = vmatprep.subr.mxu0 %v378
    %1455 = vmatpush1.msra.mxu0 %v377
    %1456 = vmatprep.subr.mxu0 %v382
    %1457 = vmatpush1.msra.mxu0 %v381
    %1458 = vmatprep.subr.mxu0 %v386
    %1459 = vmatpush1.msra.mxu0 %v385
    %1460 = vmatprep.subr.mxu0 0.0
    %1461 = vmatpush1.msra.mxu0 0.0
    %1462 = vmatprep.subr.mxu0 0.0
    %1463 = vmatpush1.msra.mxu0 0.0
    %1464 = vmatprep.subr.mxu0 0.0
    %1465 = vmatpush1.msra.mxu0 0.0
    %1466 = vmatprep.subr.mxu0 0.0
    %1467 = vmatpush1.msra.mxu0 0.0
    %1468 = vmatprep.subr.mxu0 0.0
    %1469 = vmatpush1.msra.mxu0 0.0
    %1470 = vmatprep.subr.mxu0 0.0
    %1471 = vmatpush1.msra.mxu0 0.0
    %1472 = vmatprep.subr.mxu0 0.0
    %1473 = vmatpush1.msra.mxu0 0.0
    %1474 = vmatprep.subr.mxu0 0.0
    %1475 = vmatpush1.msra.mxu0 0.0
    %1476 = vmatprep.subr.mxu0 0.0
    %1477 = vmatpush1.msra.mxu0 0.0
    %1478 = vmatprep.subr.mxu0 0.0
    %1479 = vmatpush1.msra.mxu0 0.0
    %1480 = vmatprep.subr.mxu0 0.0
    %1481 = vmatpush1.msra.mxu0 0.0
    %1482 = vmatprep.subr.mxu0 0.0
    %1483 = vmatpush1.msra.mxu0 0.0
    %1484 = vmatprep.subr.mxu0 0.0
    %1485 = vmatpush1.msra.mxu0 0.0
    %1486 = vmatprep.subr.mxu0 0.0
    %1487 = vmatpush1.msra.mxu0 0.0
    %1488 = vmatprep.subr.mxu0 0.0
    %1489 = vmatpush1.msra.mxu0 0.0
    %1490 = vmatprep.subr.mxu0 0.0
    %1491 = vmatpush1.msra.mxu0 0.0
    %1492 = vmatprep.mubr.f32.mxu0 0.0
    %1493 = vmatmul.mubr.f32.gmra.mrb[0].mxu0 %v1354
    %v1494 = vpop.f32.mrb[0].mxu0
    %v1495 = vadd.f32 0.0, %v1494
    %v1496 = vpop.f32.mrb[0].mxu0
    %v1497 = vadd.f32 0.0, %v1496
    %1498 = vdwg.mxu0
    %v1503 = vcombine.low %v1424, %v1426
    %v1504 = vcombine.low %v1495, %v1497
    %v1506 = vunpack.c.l.s4 1966171168
    %v1507 = vunpack.c.0.s8 %v1506
    %v1508 = vlaneseq
    %v1509 = vshrl.u32 %v1508, 7
    %v1510 = vsub.s32 %v1507, %v1509
    %v1511 = vrot.slane %v1503, %v1510
    %v1513 = vunpack.c.l.s4 1966171168
    %v1514 = vunpack.c.0.s8 %v1513
    %v1515 = vlaneseq
    %v1516 = vshrl.u32 %v1515, 7
    %v1517 = vsub.s32 %v1514, %v1516
    %v1518 = vrot.slane %v1504, %v1517
    %v1519 = vcombine.low %v1511, %v1518
    %v1521 = vunpack.c.l.s4 1966171168
    %v1522 = vunpack.c.0.s8 %v1521
    %v1523 = vlaneseq
    %v1524 = vshrl.u32 %v1523, 7
    %v1525 = vsub.s32 %v1522, %v1524
    %v1526 = vrot.slane %v1519, %v1525
    %v1528 = vadd.f32 %v1356, %v1526
    %v1529 = vxor.u32 %v1528, 2147483648
    %v1530 = vmul.f32 %v1529, 1.442695
    %v1531 = vpow.pop %v1530
    %v1532 = vadd.f32 %v1531, 1.0
    %v1533 = vrcp.pop %v1532
    %v1534 = vmul.f32 1.0, %v1533
    %v1536 = vrot.slane %v1528, 3
    %v1538 = vtanh.pop %v1536
    %v1540 = vrot.slane %v1534, 1
    %v1542 = vmul.f32 %v1540, %v1350
    %v1543 = vmul.f32 %v1534, %v1538
    %v1544 = vadd.f32 %v1542, %v1543
    %v1545 = vtanh.pop %v1544
    %v1546 = vrot.slane %v1534, 2
    %v1548 = vmul.f32 %v1546, %v1545
    %s1549 = scalar_lea.vmem [#allocation2], 6
    %v1550 = vld [vmem:[%s1549] ss:$8 sm:$0xf]
    %1551 = vmatprep.subr.mxu0 %v324
    %1552 = vmatpush1.msra.mxu0 %v323
    %1553 = vmatprep.subr.mxu0 %v328
    %1554 = vmatpush1.msra.mxu0 %v327
    %1555 = vmatprep.subr.mxu0 %v332
    %1556 = vmatpush1.msra.mxu0 %v331
    %1557 = vmatprep.subr.mxu0 %v336
    %1558 = vmatpush1.msra.mxu0 %v335
    %1559 = vmatprep.subr.mxu0 %v340
    %1560 = vmatpush1.msra.mxu0 %v339
    %1561 = vmatprep.subr.mxu0 %v344
    %1562 = vmatpush1.msra.mxu0 %v343
    %1563 = vmatprep.subr.mxu0 %v348
    %1564 = vmatpush1.msra.mxu0 %v347
    %1565 = vmatprep.subr.mxu0 %v352
    %1566 = vmatpush1.msra.mxu0 %v351
    %1567 = vmatprep.subr.mxu0 %v356
    %1568 = vmatpush1.msra.mxu0 %v355
    %1569 = vmatprep.subr.mxu0 %v360
    %1570 = vmatpush1.msra.mxu0 %v359
    %1571 = vmatprep.subr.mxu0 %v364
    %1572 = vmatpush1.msra.mxu0 %v363
    %1573 = vmatprep.subr.mxu0 %v368
    %1574 = vmatpush1.msra.mxu0 %v367
    %1575 = vmatprep.subr.mxu0 %v372
    %1576 = vmatpush1.msra.mxu0 %v371
    %1577 = vmatprep.subr.mxu0 %v376
    %1578 = vmatpush1.msra.mxu0 %v375
    %1579 = vmatprep.subr.mxu0 %v380
    %1580 = vmatpush1.msra.mxu0 %v379
    %1581 = vmatprep.subr.mxu0 %v384
    %1582 = vmatpush1.msra.mxu0 %v383
    %1583 = vmatprep.subr.mxu0 0.0
    %1584 = vmatpush1.msra.mxu0 0.0
    %1585 = vmatprep.subr.mxu0 0.0
    %1586 = vmatpush1.msra.mxu0 0.0
    %1587 = vmatprep.subr.mxu0 0.0
    %1588 = vmatpush1.msra.mxu0 0.0
    %1589 = vmatprep.subr.mxu0 0.0
    %1590 = vmatpush1.msra.mxu0 0.0
    %1591 = vmatprep.subr.mxu0 0.0
    %1592 = vmatpush1.msra.mxu0 0.0
    %1593 = vmatprep.subr.mxu0 0.0
    %1594 = vmatpush1.msra.mxu0 0.0
    %1595 = vmatprep.subr.mxu0 0.0
    %1596 = vmatpush1.msra.mxu0 0.0
    %1597 = vmatprep.subr.mxu0 0.0
    %1598 = vmatpush1.msra.mxu0 0.0
    %1599 = vmatprep.subr.mxu0 0.0
    %1600 = vmatpush1.msra.mxu0 0.0
    %1601 = vmatprep.subr.mxu0 0.0
    %1602 = vmatpush1.msra.mxu0 0.0
    %1603 = vmatprep.subr.mxu0 0.0
    %1604 = vmatpush1.msra.mxu0 0.0
    %1605 = vmatprep.subr.mxu0 0.0
    %1606 = vmatpush1.msra.mxu0 0.0
    %1607 = vmatprep.subr.mxu0 0.0
    %1608 = vmatpush1.msra.mxu0 0.0
    %1609 = vmatprep.subr.mxu0 0.0
    %1610 = vmatpush1.msra.mxu0 0.0
    %1611 = vmatprep.subr.mxu0 0.0
    %1612 = vmatpush1.msra.mxu0 0.0
    %1613 = vmatprep.subr.mxu0 0.0
    %1614 = vmatpush1.msra.mxu0 0.0
    %1615 = vmatprep.mubr.f32.mxu0 0.0
    %1616 = vmatmul.mubr.f32.gmra.mrb[0].mxu0 %v1548
    %v1617 = vpop.f32.mrb[0].mxu0
    %v1618 = vadd.f32 0.0, %v1617
    %v1619 = vpop.f32.mrb[0].mxu0
    %v1620 = vadd.f32 0.0, %v1619
    %1621 = vdwg.mxu0
    %1622 = vmatprep.subr.mxu0 %v326
    %1623 = vmatpush1.msra.mxu0 %v325
    %1624 = vmatprep.subr.mxu0 %v330
    %1625 = vmatpush1.msra.mxu0 %v329
    %1626 = vmatprep.subr.mxu0 %v334
    %1627 = vmatpush1.msra.mxu0 %v333
    %1628 = vmatprep.subr.mxu0 %v338
    %1629 = vmatpush1.msra.mxu0 %v337
    %1630 = vmatprep.subr.mxu0 %v342
    %1631 = vmatpush1.msra.mxu0 %v341
    %1632 = vmatprep.subr.mxu0 %v346
    %1633 = vmatpush1.msra.mxu0 %v345
    %1634 = vmatprep.subr.mxu0 %v350
    %1635 = vmatpush1.msra.mxu0 %v349
    %1636 = vmatprep.subr.mxu0 %v354
    %1637 = vmatpush1.msra.mxu0 %v353
    %1638 = vmatprep.subr.mxu0 %v358
    %1639 = vmatpush1.msra.mxu0 %v357
    %1640 = vmatprep.subr.mxu0 %v362
    %1641 = vmatpush1.msra.mxu0 %v361
    %1642 = vmatprep.subr.mxu0 %v366
    %1643 = vmatpush1.msra.mxu0 %v365
    %1644 = vmatprep.subr.mxu0 %v370
    %1645 = vmatpush1.msra.mxu0 %v369
    %1646 = vmatprep.subr.mxu0 %v374
    %1647 = vmatpush1.msra.mxu0 %v373
    %1648 = vmatprep.subr.mxu0 %v378
    %1649 = vmatpush1.msra.mxu0 %v377
    %1650 = vmatprep.subr.mxu0 %v382
    %1651 = vmatpush1.msra.mxu0 %v381
    %1652 = vmatprep.subr.mxu0 %v386
    %1653 = vmatpush1.msra.mxu0 %v385
    %1654 = vmatprep.subr.mxu0 0.0
    %1655 = vmatpush1.msra.mxu0 0.0
    %1656 = vmatprep.subr.mxu0 0.0
    %1657 = vmatpush1.msra.mxu0 0.0
    %1658 = vmatprep.subr.mxu0 0.0
    %1659 = vmatpush1.msra.mxu0 0.0
    %1660 = vmatprep.subr.mxu0 0.0
    %1661 = vmatpush1.msra.mxu0 0.0
    %1662 = vmatprep.subr.mxu0 0.0
    %1663 = vmatpush1.msra.mxu0 0.0
    %1664 = vmatprep.subr.mxu0 0.0
    %1665 = vmatpush1.msra.mxu0 0.0
    %1666 = vmatprep.subr.mxu0 0.0
    %1667 = vmatpush1.msra.mxu0 0.0
    %1668 = vmatprep.subr.mxu0 0.0
    %1669 = vmatpush1.msra.mxu0 0.0
    %1670 = vmatprep.subr.mxu0 0.0
    %1671 = vmatpush1.msra.mxu0 0.0
    %1672 = vmatprep.subr.mxu0 0.0
    %1673 = vmatpush1.msra.mxu0 0.0
    %1674 = vmatprep.subr.mxu0 0.0
    %1675 = vmatpush1.msra.mxu0 0.0
    %1676 = vmatprep.subr.mxu0 0.0
    %1677 = vmatpush1.msra.mxu0 0.0
    %1678 = vmatprep.subr.mxu0 0.0
    %1679 = vmatpush1.msra.mxu0 0.0
    %1680 = vmatprep.subr.mxu0 0.0
    %1681 = vmatpush1.msra.mxu0 0.0
    %1682 = vmatprep.subr.mxu0 0.0
    %1683 = vmatpush1.msra.mxu0 0.0
    %1684 = vmatprep.subr.mxu0 0.0
    %1685 = vmatpush1.msra.mxu0 0.0
    %1686 = vmatprep.mubr.f32.mxu0 0.0
    %1687 = vmatmul.mubr.f32.gmra.mrb[0].mxu0 %v1548
    %v1688 = vpop.f32.mrb[0].mxu0
    %v1689 = vadd.f32 0.0, %v1688
    %v1690 = vpop.f32.mrb[0].mxu0
    %v1691 = vadd.f32 0.0, %v1690
    %1692 = vdwg.mxu0
    %v1697 = vcombine.low %v1618, %v1620
    %v1698 = vcombine.low %v1689, %v1691
    %v1700 = vunpack.c.l.s4 1966171168
    %v1701 = vunpack.c.0.s8 %v1700
    %v1702 = vlaneseq
    %v1703 = vshrl.u32 %v1702, 7
    %v1704 = vsub.s32 %v1701, %v1703
    %v1705 = vrot.slane %v1697, %v1704
    %v1707 = vunpack.c.l.s4 1966171168
    %v1708 = vunpack.c.0.s8 %v1707
    %v1709 = vlaneseq
    %v1710 = vshrl.u32 %v1709, 7
    %v1711 = vsub.s32 %v1708, %v1710
    %v1712 = vrot.slane %v1698, %v1711
    %v1713 = vcombine.low %v1705, %v1712
    %v1715 = vunpack.c.l.s4 1966171168
    %v1716 = vunpack.c.0.s8 %v1715
    %v1717 = vlaneseq
    %v1718 = vshrl.u32 %v1717, 7
    %v1719 = vsub.s32 %v1716, %v1718
    %v1720 = vrot.slane %v1713, %v1719
    %v1722 = vadd.f32 %v1550, %v1720
    %v1723 = vxor.u32 %v1722, 2147483648
    %v1724 = vmul.f32 %v1723, 1.442695
    %v1725 = vpow.pop %v1724
    %v1726 = vadd.f32 %v1725, 1.0
    %v1727 = vrcp.pop %v1726
    %v1728 = vmul.f32 1.0, %v1727
    %v1730 = vrot.slane %v1722, 3
    %v1732 = vtanh.pop %v1730
    %v1734 = vrot.slane %v1728, 1
    %v1736 = vmul.f32 %v1734, %v1544
    %v1737 = vmul.f32 %v1728, %v1732
    %v1738 = vadd.f32 %v1736, %v1737
    %v1739 = vtanh.pop %v1738
    %v1740 = vrot.slane %v1728, 2
    %v1742 = vmul.f32 %v1740, %v1739
    %s1743 = scalar_lea.vmem [#allocation2], 7
    %v1744 = vld [vmem:[%s1743] ss:$8 sm:$0xf]
    %1745 = vmatprep.subr.mxu0 %v324
    %1746 = vmatpush1.msra.mxu0 %v323
    %1747 = vmatprep.subr.mxu0 %v328
    %1748 = vmatpush1.msra.mxu0 %v327
    %1749 = vmatprep.subr.mxu0 %v332
    %1750 = vmatpush1.msra.mxu0 %v331
    %1751 = vmatprep.subr.mxu0 %v336
    %1752 = vmatpush1.msra.mxu0 %v335
    %1753 = vmatprep.subr.mxu0 %v340
    %1754 = vmatpush1.msra.mxu0 %v339
    %1755 = vmatprep.subr.mxu0 %v344
    %1756 = vmatpush1.msra.mxu0 %v343
    %1757 = vmatprep.subr.mxu0 %v348
    %1758 = vmatpush1.msra.mxu0 %v347
    %1759 = vmatprep.subr.mxu0 %v352
    %1760 = vmatpush1.msra.mxu0 %v351
    %1761 = vmatprep.subr.mxu0 %v356
    %1762 = vmatpush1.msra.mxu0 %v355
    %1763 = vmatprep.subr.mxu0 %v360
    %1764 = vmatpush1.msra.mxu0 %v359
    %1765 = vmatprep.subr.mxu0 %v364
    %1766 = vmatpush1.msra.mxu0 %v363
    %1767 = vmatprep.subr.mxu0 %v368
    %1768 = vmatpush1.msra.mxu0 %v367
    %1769 = vmatprep.subr.mxu0 %v372
    %1770 = vmatpush1.msra.mxu0 %v371
    %1771 = vmatprep.subr.mxu0 %v376
    %1772 = vmatpush1.msra.mxu0 %v375
    %1773 = vmatprep.subr.mxu0 %v380
    %1774 = vmatpush1.msra.mxu0 %v379
    %1775 = vmatprep.subr.mxu0 %v384
    %1776 = vmatpush1.msra.mxu0 %v383
    %1777 = vmatprep.subr.mxu0 0.0
    %1778 = vmatpush1.msra.mxu0 0.0
    %1779 = vmatprep.subr.mxu0 0.0
    %1780 = vmatpush1.msra.mxu0 0.0
    %1781 = vmatprep.subr.mxu0 0.0
    %1782 = vmatpush1.msra.mxu0 0.0
    %1783 = vmatprep.subr.mxu0 0.0
    %1784 = vmatpush1.msra.mxu0 0.0
    %1785 = vmatprep.subr.mxu0 0.0
    %1786 = vmatpush1.msra.mxu0 0.0
    %1787 = vmatprep.subr.mxu0 0.0
    %1788 = vmatpush1.msra.mxu0 0.0
    %1789 = vmatprep.subr.mxu0 0.0
    %1790 = vmatpush1.msra.mxu0 0.0
    %1791 = vmatprep.subr.mxu0 0.0
    %1792 = vmatpush1.msra.mxu0 0.0
    %1793 = vmatprep.subr.mxu0 0.0
    %1794 = vmatpush1.msra.mxu0 0.0
    %1795 = vmatprep.subr.mxu0 0.0
    %1796 = vmatpush1.msra.mxu0 0.0
    %1797 = vmatprep.subr.mxu0 0.0
    %1798 = vmatpush1.msra.mxu0 0.0
    %1799 = vmatprep.subr.mxu0 0.0
    %1800 = vmatpush1.msra.mxu0 0.0
    %1801 = vmatprep.subr.mxu0 0.0
    %1802 = vmatpush1.msra.mxu0 0.0
    %1803 = vmatprep.subr.mxu0 0.0
    %1804 = vmatpush1.msra.mxu0 0.0
    %1805 = vmatprep.subr.mxu0 0.0
    %1806 = vmatpush1.msra.mxu0 0.0
    %1807 = vmatprep.subr.mxu0 0.0
    %1808 = vmatpush1.msra.mxu0 0.0
    %1809 = vmatprep.mubr.f32.mxu0 0.0
    %1810 = vmatmul.mubr.f32.gmra.mrb[0].mxu0 %v1742
    %v1811 = vpop.f32.mrb[0].mxu0
    %v1812 = vadd.f32 0.0, %v1811
    %v1813 = vpop.f32.mrb[0].mxu0
    %v1814 = vadd.f32 0.0, %v1813
    %1815 = vdwg.mxu0
    %1816 = vmatprep.subr.mxu0 %v326
    %1817 = vmatpush1.msra.mxu0 %v325
    %1818 = vmatprep.subr.mxu0 %v330
    %1819 = vmatpush1.msra.mxu0 %v329
    %1820 = vmatprep.subr.mxu0 %v334
    %1821 = vmatpush1.msra.mxu0 %v333
    %1822 = vmatprep.subr.mxu0 %v338
    %1823 = vmatpush1.msra.mxu0 %v337
    %1824 = vmatprep.subr.mxu0 %v342
    %1825 = vmatpush1.msra.mxu0 %v341
    %1826 = vmatprep.subr.mxu0 %v346
    %1827 = vmatpush1.msra.mxu0 %v345
    %1828 = vmatprep.subr.mxu0 %v350
    %1829 = vmatpush1.msra.mxu0 %v349
    %1830 = vmatprep.subr.mxu0 %v354
    %1831 = vmatpush1.msra.mxu0 %v353
    %1832 = vmatprep.subr.mxu0 %v358
    %1833 = vmatpush1.msra.mxu0 %v357
    %1834 = vmatprep.subr.mxu0 %v362
    %1835 = vmatpush1.msra.mxu0 %v361
    %1836 = vmatprep.subr.mxu0 %v366
    %1837 = vmatpush1.msra.mxu0 %v365
    %1838 = vmatprep.subr.mxu0 %v370
    %1839 = vmatpush1.msra.mxu0 %v369
    %1840 = vmatprep.subr.mxu0 %v374
    %1841 = vmatpush1.msra.mxu0 %v373
    %1842 = vmatprep.subr.mxu0 %v378
    %1843 = vmatpush1.msra.mxu0 %v377
    %1844 = vmatprep.subr.mxu0 %v382
    %1845 = vmatpush1.msra.mxu0 %v381
    %1846 = vmatprep.subr.mxu0 %v386
    %1847 = vmatpush1.msra.mxu0 %v385
    %1848 = vmatprep.subr.mxu0 0.0
    %1849 = vmatpush1.msra.mxu0 0.0
    %1850 = vmatprep.subr.mxu0 0.0
    %1851 = vmatpush1.msra.mxu0 0.0
    %1852 = vmatprep.subr.mxu0 0.0
    %1853 = vmatpush1.msra.mxu0 0.0
    %1854 = vmatprep.subr.mxu0 0.0
    %1855 = vmatpush1.msra.mxu0 0.0
    %1856 = vmatprep.subr.mxu0 0.0
    %1857 = vmatpush1.msra.mxu0 0.0
    %1858 = vmatprep.subr.mxu0 0.0
    %1859 = vmatpush1.msra.mxu0 0.0
    %1860 = vmatprep.subr.mxu0 0.0
    %1861 = vmatpush1.msra.mxu0 0.0
    %1862 = vmatprep.subr.mxu0 0.0
    %1863 = vmatpush1.msra.mxu0 0.0
    %1864 = vmatprep.subr.mxu0 0.0
    %1865 = vmatpush1.msra.mxu0 0.0
    %1866 = vmatprep.subr.mxu0 0.0
    %1867 = vmatpush1.msra.mxu0 0.0
    %1868 = vmatprep.subr.mxu0 0.0
    %1869 = vmatpush1.msra.mxu0 0.0
    %1870 = vmatprep.subr.mxu0 0.0
    %1871 = vmatpush1.msra.mxu0 0.0
    %1872 = vmatprep.subr.mxu0 0.0
    %1873 = vmatpush1.msra.mxu0 0.0
    %1874 = vmatprep.subr.mxu0 0.0
    %1875 = vmatpush1.msra.mxu0 0.0
    %1876 = vmatprep.subr.mxu0 0.0
    %1877 = vmatpush1.msra.mxu0 0.0
    %1878 = vmatprep.subr.mxu0 0.0
    %1879 = vmatpush1.msra.mxu0 0.0
    %1880 = vmatprep.mubr.f32.mxu0 0.0
    %1881 = vmatmul.mubr.f32.gmra.mrb[0].mxu0 %v1742
    %v1882 = vpop.f32.mrb[0].mxu0
    %v1883 = vadd.f32 0.0, %v1882
    %v1884 = vpop.f32.mrb[0].mxu0
    %v1885 = vadd.f32 0.0, %v1884
    %1886 = vdwg.mxu0
    %v1891 = vcombine.low %v1812, %v1814
    %v1892 = vcombine.low %v1883, %v1885
    %v1894 = vunpack.c.l.s4 1966171168
    %v1895 = vunpack.c.0.s8 %v1894
    %v1896 = vlaneseq
    %v1897 = vshrl.u32 %v1896, 7
    %v1898 = vsub.s32 %v1895, %v1897
    %v1899 = vrot.slane %v1891, %v1898
    %v1901 = vunpack.c.l.s4 1966171168
    %v1902 = vunpack.c.0.s8 %v1901
    %v1903 = vlaneseq
    %v1904 = vshrl.u32 %v1903, 7
    %v1905 = vsub.s32 %v1902, %v1904
    %v1906 = vrot.slane %v1892, %v1905
    %v1907 = vcombine.low %v1899, %v1906
    %v1909 = vunpack.c.l.s4 1966171168
    %v1910 = vunpack.c.0.s8 %v1909
    %v1911 = vlaneseq
    %v1912 = vshrl.u32 %v1911, 7
    %v1913 = vsub.s32 %v1910, %v1912
    %v1914 = vrot.slane %v1907, %v1913
    %v1916 = vadd.f32 %v1744, %v1914
    %v1917 = vxor.u32 %v1916, 2147483648
    %v1918 = vmul.f32 %v1917, 1.442695
    %v1919 = vpow.pop %v1918
    %v1920 = vadd.f32 %v1919, 1.0
    %v1921 = vrcp.pop %v1920
    %v1922 = vmul.f32 1.0, %v1921
    %v1924 = vrot.slane %v1916, 3
    %v1926 = vtanh.pop %v1924
    %v1928 = vrot.slane %v1922, 1
    %v1930 = vmul.f32 %v1928, %v1738
    %v1931 = vmul.f32 %v1922, %v1926
    %v1932 = vadd.f32 %v1930, %v1931
    %v1933 = vtanh.pop %v1932
    %v1934 = vrot.slane %v1922, 2
    %v1936 = vmul.f32 %v1934, %v1933
    %v1938 = vlaneseq
    %v1939 = vshrl.u32 %v1938, 7
    %v1940 = vsub.s32 0, %v1939
    %v1941 = vrot.slane %v772, %v1940
    %v1944 = vlaneseq
    %v1945 = vshrl.u32 %v1944, 7
    %v1946 = vsub.s32 0, %v1945
    %v1947 = vrot.slane %v966, %v1946
    %v1950 = vlaneseq
    %v1951 = vshrl.u32 %v1950, 7
    %v1952 = vsub.s32 0, %v1951
    %v1953 = vrot.slane %v1160, %v1952
    %v1956 = vlaneseq
    %v1957 = vshrl.u32 %v1956, 7
    %v1958 = vsub.s32 0, %v1957
    %v1959 = vrot.slane %v1354, %v1958
    %v1962 = vlaneseq
    %v1963 = vshrl.u32 %v1962, 7
    %v1964 = vsub.s32 0, %v1963
    %v1965 = vrot.slane %v1548, %v1964
    %v1968 = vlaneseq
    %v1969 = vshrl.u32 %v1968, 7
    %v1970 = vsub.s32 0, %v1969
    %v1971 = vrot.slane %v1742, %v1970
    %v1974 = vlaneseq
    %v1975 = vshrl.u32 %v1974, 7
    %v1976 = vsub.s32 0, %v1975
    %v1977 = vrot.slane %v1936, %v1976
    %vm1979 = vcmask 1040384
    %v1980 = vsel %vm1979, %v578, %v1941
    %vm1981 = vcmask 1041408
    %v1982 = vsel %vm1981, %v1980, %v1947
    %vm1983 = vcmask 1042432
    %v1984 = vsel %vm1983, %v1982, %v1953
    %vm1985 = vcmask 1043456
    %v1986 = vsel %vm1985, %v1984, %v1959
    %vm1987 = vcmask 1044480
    %v1988 = vsel %vm1987, %v1986, %v1965
    %vm1989 = vcmask 1045504
    %v1990 = vsel %vm1989, %v1988, %v1971
    %vm1991 = vcmask 1046528
    %v1992 = vsel %vm1991, %v1990, %v1977
    %1993 = vst [vmem:[#allocation13] sm:$0x1] %v1936
    %1994 = vst [vmem:[#allocation15] sm:$0x1] %v1932
    %v1995 = vld [vmem:[#allocation10] sm:$0xff]
    %v1996 = vld [vmem:[#allocation10 + $0x8] sm:$0xff]
    %v1997 = vld [vmem:[#allocation10 + $0x10] sm:$0xff]
    %v1998 = vld [vmem:[#allocation10 + $0x18] sm:$0xff]
    %v1999 = vld [vmem:[#allocation10 + $0x20] sm:$0xff]
    %v2000 = vld [vmem:[#allocation10 + $0x28] sm:$0xff]
    %v2001 = vld [vmem:[#allocation10 + $0x30] sm:$0xff]
    %v2002 = vld [vmem:[#allocation10 + $0x38] sm:$0xff]
    %v2003 = vld [vmem:[#allocation10 + $0x40] sm:$0xff]
    %v2004 = vld [vmem:[#allocation10 + $0x48] sm:$0xff]
    %v2005 = vld [vmem:[#allocation10 + $0x50] sm:$0xff]
    %v2006 = vld [vmem:[#allocation10 + $0x58] sm:$0xff]
    %v2007 = vld [vmem:[#allocation10 + $0x60] sm:$0xff]
    %v2008 = vld [vmem:[#allocation10 + $0x68] sm:$0xff]
    %v2009 = vld [vmem:[#allocation10 + $0x70] sm:$0xff]
    %v2010 = vld [vmem:[#allocation10 + $0x78] sm:$0xff]
    %v2011 = vld [vmem:[%s5] sm:$0x1]
    %v2013 = vlaneseq
    %v2014 = vshrl.u32 %v2013, 7
    %v2015 = vsub.s32 0, %v2014
    %v2016 = vrot.slane %v2011, %v2015
    %2018 = vmatprep.subr.mxu0 0.0
    %2019 = vmatpush1.msra.mxu0 %v1995
    %2020 = vmatprep.subr.mxu0 0.0
    %2021 = vmatpush1.msra.mxu0 %v1996
    %2022 = vmatprep.subr.mxu0 0.0
    %2023 = vmatpush1.msra.mxu0 %v1997
    %2024 = vmatprep.subr.mxu0 0.0
    %2025 = vmatpush1.msra.mxu0 %v1998
    %2026 = vmatprep.subr.mxu0 0.0
    %2027 = vmatpush1.msra.mxu0 %v1999
    %2028 = vmatprep.subr.mxu0 0.0
    %2029 = vmatpush1.msra.mxu0 %v2000
    %2030 = vmatprep.subr.mxu0 0.0
    %2031 = vmatpush1.msra.mxu0 %v2001
    %2032 = vmatprep.subr.mxu0 0.0
    %2033 = vmatpush1.msra.mxu0 %v2002
    %2034 = vmatprep.subr.mxu0 0.0
    %2035 = vmatpush1.msra.mxu0 %v2003
    %2036 = vmatprep.subr.mxu0 0.0
    %2037 = vmatpush1.msra.mxu0 %v2004
    %2038 = vmatprep.subr.mxu0 0.0
    %2039 = vmatpush1.msra.mxu0 %v2005
    %2040 = vmatprep.subr.mxu0 0.0
    %2041 = vmatpush1.msra.mxu0 %v2006
    %2042 = vmatprep.subr.mxu0 0.0
    %2043 = vmatpush1.msra.mxu0 %v2007
    %2044 = vmatprep.subr.mxu0 0.0
    %2045 = vmatpush1.msra.mxu0 %v2008
    %2046 = vmatprep.subr.mxu0 0.0
    %2047 = vmatpush1.msra.mxu0 %v2009
    %2048 = vmatprep.subr.mxu0 0.0
    %2049 = vmatpush1.msra.mxu0 %v2010
    %2050 = vmatprep.subr.mxu0 0.0
    %2051 = vmatpush1.msra.mxu0 0.0
    %2052 = vmatprep.subr.mxu0 0.0
    %2053 = vmatpush1.msra.mxu0 0.0
    %2054 = vmatprep.subr.mxu0 0.0
    %2055 = vmatpush1.msra.mxu0 0.0
    %2056 = vmatprep.subr.mxu0 0.0
    %2057 = vmatpush1.msra.mxu0 0.0
    %2058 = vmatprep.subr.mxu0 0.0
    %2059 = vmatpush1.msra.mxu0 0.0
    %2060 = vmatprep.subr.mxu0 0.0
    %2061 = vmatpush1.msra.mxu0 0.0
    %2062 = vmatprep.subr.mxu0 0.0
    %2063 = vmatpush1.msra.mxu0 0.0
    %2064 = vmatprep.subr.mxu0 0.0
    %2065 = vmatpush1.msra.mxu0 0.0
    %2066 = vmatprep.subr.mxu0 0.0
    %2067 = vmatpush1.msra.mxu0 0.0
    %2068 = vmatprep.subr.mxu0 0.0
    %2069 = vmatpush1.msra.mxu0 0.0
    %2070 = vmatprep.subr.mxu0 0.0
    %2071 = vmatpush1.msra.mxu0 0.0
    %2072 = vmatprep.subr.mxu0 0.0
    %2073 = vmatpush1.msra.mxu0 0.0
    %2074 = vmatprep.subr.mxu0 0.0
    %2075 = vmatpush1.msra.mxu0 0.0
    %2076 = vmatprep.subr.mxu0 0.0
    %2077 = vmatpush1.msra.mxu0 0.0
    %2078 = vmatprep.subr.mxu0 0.0
    %2079 = vmatpush1.msra.mxu0 0.0
    %2080 = vmatprep.subr.mxu0 0.0
    %2081 = vmatpush1.msra.mxu0 0.0
    %2082 = vmatprep.mubr.f32.mxu0 0.0
    %2083 = vmatmul.mubr.f32.gmra.mrb[0].mxu0 %v1992
    %v2084 = vpop.f32.mrb[0].mxu0
    %v2085 = vadd.f32 %v2016, %v2084
    %v2086 = vpop.f32.mrb[0].mxu0
    %2087 = vdwg.mxu0
    %2088 = vmax.xlane.f32.xlu0 %v2085
    %v2089 = vpop.xlane.xlu0 %2088
    %v2090 = vsub.f32 %v2085, %v2089
    %v2091 = vmul.f32 %v2090, 1.442695
    %v2092 = vpow.pop %v2091
    %2093 = vadd.xlane.f32.xlu0 %v2092
    %v2094 = vpop.xlane.xlu0 %2093
    %v2095 = vlog2.pop %v2094
    %v2096 = vmul.f32 %v2095, 0.6931472
    %v2097 = vsub.f32 %v2090, %v2096
    %2098 = vst [vmem:[#allocation12] sm:$0xff] %v2097
    // Predicated region
    $region50: #{tpu_custom_call.1} parent=1 // pred_check
      _
    $region51: #{tpu_custom_call.1} parent=1 // pred_check_branch
      %2100 = sbr.rel (0) target = $region53
    $region52: #{tpu_custom_call.1} parent=1 // pred_region
      %s2102 = ssub.s32 128, 128
      %2103 = vsyncadd [#allocation6], %s2102
      %s2105 = sshll.u32 [#allocation12], 4
      %s2106 = int_to_ptr.vmem [resolvable:$true] %s2105
      %2108 = dma.vmem_to_hbm [thread:$0]  %s2106, 128, %s8, [#allocation6]
    $region53: #{tpu_custom_call.1} parent=1 // pred_fallthru
      _
    // Predicated region
    $region54: #{tpu_custom_call.1} parent=1 // pred_check
      _
    $region55: #{tpu_custom_call.1} parent=1 // pred_check_branch
      %2110 = sbr.rel (0) target = $region57
    $region56: #{tpu_custom_call.1} parent=1 // pred_region
      %s2112 = ssub.s32 16, 16
      %2113 = vsyncadd [#allocation14], %s2112
      %s2115 = sshll.u32 [#allocation13], 4
      %s2116 = int_to_ptr.vmem [resolvable:$true] %s2115
      %2118 = dma.vmem_to_hbm [thread:$0]  %s2116, 16, %s9, [#allocation14]
    $region57: #{tpu_custom_call.1} parent=1 // pred_fallthru
      _
    // Predicated region
    $region58: #{tpu_custom_call.1} parent=1 // pred_check
      _
    $region59: #{tpu_custom_call.1} parent=1 // pred_check_branch
      %2120 = sbr.rel (0) target = $region61
    $region60: #{tpu_custom_call.1} parent=1 // pred_region
      %s2122 = ssub.s32 16, 16
      %2123 = vsyncadd [#allocation14], %s2122
      %s2125 = sshll.u32 [#allocation15], 4
      %s2126 = int_to_ptr.vmem [resolvable:$true] %s2125
      %2128 = dma.vmem_to_hbm [thread:$0]  %s2126, 16, %s10, [#allocation14]
    $region61: #{tpu_custom_call.1} parent=1 // pred_fallthru
      _
    // Predicated region
    $region62: #{tpu_custom_call.1} parent=1 // pred_check
      _
    $region63: #{tpu_custom_call.1} parent=1 // pred_check_branch
      %2130 = sbr.rel (0) target = $region65
    $region64: #{tpu_custom_call.1} parent=1 // pred_region
      %2131 = dma.done [#allocation6], 128
    $region65: #{tpu_custom_call.1} parent=1 // pred_fallthru
      _
    // Predicated region
    $region66: #{tpu_custom_call.1} parent=1 // pred_check
      _
    $region67: #{tpu_custom_call.1} parent=1 // pred_check_branch
      %2133 = sbr.rel (0) target = $region69
    $region68: #{tpu_custom_call.1} parent=1 // pred_region
      %2134 = dma.done [#allocation14], 16
    $region69: #{tpu_custom_call.1} parent=1 // pred_fallthru
      _
    // Predicated region
    $region70: #{tpu_custom_call.1} parent=1 // pred_check
      _
    $region71: #{tpu_custom_call.1} parent=1 // pred_check_branch
      %2136 = sbr.rel (0) target = $region73
    $region72: #{tpu_custom_call.1} parent=1 // pred_region
      %2137 = dma.done [#allocation14], 16
    $region73: #{tpu_custom_call.1} parent=1 // pred_fallthru
      _
    %2138 = vsyncpa [#allocation5], 1
    %2139 = vsyncpa [#allocation8], 1
    %2140 = vsyncpa [#allocation11], 1
    %2141 = vsyncpa [#allocation6], 1
    %2142 = vsyncpa [#allocation14], 1

</llo_original>
